<compile_context>
chip_gen: v5e
topology: v5e:2x2
jax: 0.10.0
libtpu: 0.0.40
codegen_flags: <defaults>
</compile_context>

<pallas_src>
import functools

import jax
import jax.numpy as jnp
import numpy as np
from jax.experimental import pallas as pl
from jax.experimental.pallas import tpu as pltpu


# -----------------------------------------------------------------------------
# Pallas kernel: one block of `bblk` batch rows per grid step.
# -----------------------------------------------------------------------------
def pcnn_att_kernel(x_ref,       # VMEM [Bblk*L, 3D] bf16  im2col slab
                    w_ref,       # VMEM [3D, F]      bf16  fused conv weight
                    cb_ref,      # VMEM [1, F]       f32   conv bias
                    ma_ref,      # VMEM [Bblk*L, 1]  f32   segment-A token mask {0,1}
                    mb_ref,      # VMEM [Bblk*L, 1]  f32   segment-B token mask {0,1}
                    mc_ref,      # VMEM [Bblk*L, 1]  f32   segment-C token mask {0,1}
                    attw_ref,    # VMEM [Bblk, F]    f32   attention weight rows
                    relT_ref,    # VMEM [F, Tpad]    f32   relation table^T (zero-padded)
                    rbias_ref,   # VMEM [Bblk, Tpad] f32   relation bias (-1e30 in pad lanes)
                    out_ref,     # VMEM [Bblk, Tpad] f32   output probabilities
                    cnn_ref,     # VMEM scratch [Bblk*L, F] f32
                    *, bblk, seq_len):
    # ---- Conv2d(1, F, (3, D), padding=(1, 0)) + bias + ReLU: one fused matmul
    # (bf16 operands, f32 accumulation), staged through VMEM scratch.
    cnn_ref[...] = jnp.maximum(
        jnp.dot(x_ref[...], w_ref[...], preferred_element_type=jnp.float32)
        + cb_ref[...], 0.0)                                      # [Bblk*L, F]

    nfilt = cnn_ref.shape[-1]

    # ---- piecewise (PCNN) max pooling, batched over all Bblk rows ----------
    # cnn >= 0 after ReLU, so mask*cnn followed by a per-row max equals the
    # sliced segment max of the reference (masks never select empty segments,
    # thanks to the clamps applied when the masks are built in the wrapper).
    def seg_max(mask_ref):
        masked = cnn_ref[...] * mask_ref[...]                    # [Bblk*L, F]
        return jnp.max(masked.reshape(bblk, seq_len, nfilt), axis=1)  # [Bblk, F]

    seg_a = seg_max(ma_ref)
    seg_b = seg_max(mb_ref)
    seg_c = seg_max(mc_ref)

    # ---- attention over the 3 pooled segments (batched, no per-row loop) ---
    #   a = softmax_s( att_w . tanh(H_s) ),  att = tanh( sum_s a_s * H_s )
    w_att = attw_ref[...]                                        # [Bblk, F]
    sa = jnp.sum(jnp.tanh(seg_a) * w_att, axis=1, keepdims=True)  # [Bblk, 1]
    sb = jnp.sum(jnp.tanh(seg_b) * w_att, axis=1, keepdims=True)
    sc = jnp.sum(jnp.tanh(seg_c) * w_att, axis=1, keepdims=True)
    smax = jnp.maximum(jnp.maximum(sa, sb), sc)
    ea = jnp.exp(sa - smax)
    eb = jnp.exp(sb - smax)
    ec = jnp.exp(sc - smax)
    inv = pl.reciprocal(ea + eb + ec, approx=True)               # EUP, not VALU div
    att = jnp.tanh((seg_a * ea + seg_b * eb + seg_c * ec) * inv)  # [Bblk, F]

    # ---- relation scores + softmax over the (lane-padded) tag axis ---------
    res = jnp.dot(att, relT_ref[...], preferred_element_type=jnp.float32)
    res = res + rbias_ref[...]                                   # pad lanes -> -1e30
    res = res - jnp.max(res, axis=1, keepdims=True)
    er = jnp.exp(res)                                            # pad lanes -> 0
    out_ref[...] = er * pl.reciprocal(jnp.sum(er, axis=1, keepdims=True),
                                      approx=True)               # [Bblk, Tpad]


# -----------------------------------------------------------------------------
# Glue: embeddings, im2col, segment masks, pallas_call wrapper.
# -----------------------------------------------------------------------------
def _auto_num_blocks():
    """1 grid step on single-TensorCore chips (v5e/v6e), 2 otherwise."""
    try:
        kind = jax.devices()[0].device_kind.lower()
    except Exception:
        return 2
    single_tc = any(t in kind for t in ("v5 lite", "v5e", "v6 lite", "v6e"))
    return 1 if single_tc else 2


def entity_bounds(pos1, pos2, ent_marker=60):
    """Replicates the torch.nonzero(...).min()/.max() boundary logic."""
    L = pos1.shape[1]
    idx = jnp.arange(L, dtype=jnp.int32)

    def mn_mx(p):
        mask = (p == ent_marker)
        mn = jnp.min(jnp.where(mask, idx, L), axis=-1)
        mx = jnp.max(jnp.where(mask, idx, -1), axis=-1)
        return mn, mx

    e1n, e1x = mn_mx(pos1)
    e2n, e2x = mn_mx(pos2)
    cond = e1n < e2n
    m1 = jnp.where(cond, e1n, e2n)
    m2 = jnp.where(cond, e1x, e2x)
    m3 = jnp.where(cond, e2n, e1n)
    m4 = jnp.where(cond, e2x, e1x)
    return jnp.stack([m1, m2, m3, m4], axis=1).astype(jnp.int32)


@functools.partial(jax.jit, static_argnames=("num_blocks",))
def pcnn_att_forward(sentence, pos1, pos2,
                     word_t, p1_t, p2_t, rel_table,
                     conv_w, conv_b, att_w, rel_bias, *, num_blocks=None):
    B, L = sentence.shape
    Fn = conv_w.shape[0]
    T = rel_table.shape[0]

    if num_blocks is None:
        num_blocks = _auto_num_blocks()

    # Batch blocking: whole batch in `num_blocks` grid steps, 8-row aligned
    # (sublane alignment of the (bblk, ...) blocks), capped at 64 rows/step so
    # the per-step conv slab (bblk*L*F*4 B) stays <= 256 KiB.
    bblk = -(-B // num_blocks)          # ceil
    bblk = min(-(-bblk // 8) * 8, 64)   # round up to multiple of 8, cap
    n_blk = -(-B // bblk)
    Bpad = n_blk * bblk
    pad_b = Bpad - B
    if pad_b:
        sentence = jnp.pad(sentence, ((0, pad_b), (0, 0)), mode="edge")
        pos1 = jnp.pad(pos1, ((0, pad_b), (0, 0)), mode="edge")
        pos2 = jnp.pad(pos2, ((0, pad_b), (0, 0)), mode="edge")
        att_w = jnp.pad(att_w, ((0, pad_b), (0, 0), (0, 0)), mode="edge")
        rel_bias = jnp.pad(rel_bias, ((0, pad_b), (0, 0), (0, 0)), mode="edge")

    # embedding lookups + concat (torch.cat(..., dim=2))
    embeds = jnp.concatenate(
        [word_t[sentence], p1_t[pos1], p2_t[pos2]], axis=2)               # [Bpad, L, D]
    D = embeds.shape[-1]
    K = 3 * D

    # im2col: three shifted views of the zero-padded sequence -> [Bpad*L, 3D]
    emb_pad = jnp.pad(embeds, ((0, 0), (1, 1), (0, 0)))                   # [Bpad, L+2, D]
    x_im2col = jnp.concatenate(
        [emb_pad[:, 0:L, :], emb_pad[:, 1:L + 1, :], emb_pad[:, 2:L + 2, :]], axis=2)
    x2d = x_im2col.reshape(Bpad * L, K).astype(jnp.bfloat16)

    # conv weight [F,1,3,D] -> [3D, F], tap-major (matches im2col concat order)
    w2d = jnp.transpose(conv_w[:, 0, :, :], (1, 2, 0)).reshape(K, Fn)
    w2d = w2d.astype(jnp.bfloat16)
    cb = conv_b.reshape(1, Fn).astype(jnp.float32)
    attw2d = att_w.reshape(Bpad, Fn).astype(jnp.float32)                  # [Bpad, F]

    # Lane-dense output: pad tag axis to a multiple of 128 lanes.  Padded
    # relation columns are zero and padded bias lanes are -1e30, so they
    # contribute exp()≈0 to the softmax and are sliced off below.
    Tpad = max(128, -(-T // 128) * 128)
    relT = jnp.zeros((Fn, Tpad), jnp.float32).at[:, :T].set(
        rel_table.T.astype(jnp.float32))
    rbias2d = jnp.full((Bpad, Tpad), -1e30, jnp.float32).at[:, :T].set(
        rel_bias.reshape(Bpad, T).astype(jnp.float32))

    # Per-token segment masks (built here so the kernel pooling is batched).
    # NOTE: the max(m1,1)/max(m3,m2+1) clamps are load-bearing (non-empty
    # segments, matching PyTorch slicing semantics).
    m = entity_bounds(pos1, pos2)                                         # [Bpad, 4]
    idx = jnp.arange(L, dtype=jnp.int32)[None, :]                         # [1, L]
    m1, m2, m3, m4 = (m[:, k:k + 1] for k in range(4))
    seg_a = idx < jnp.maximum(m1, 1)
    seg_b = (idx >= m2) & (idx < jnp.maximum(m3, m2 + 1))
    seg_c = idx >= m4

    def as_mask(mm):                                                      # -> [Bpad*L, 1]
        return mm.astype(jnp.float32).reshape(Bpad * L, 1)

    mask_a, mask_b, mask_c = as_mask(seg_a), as_mask(seg_b), as_mask(seg_c)

    grid_spec = pltpu.PrefetchScalarGridSpec(
        num_scalar_prefetch=0,
        grid=(n_blk,),
        in_specs=[
            pl.BlockSpec((bblk * L, K), lambda g: (g, 0)),   # im2col slab (bf16)
            pl.BlockSpec((K, Fn),       lambda g: (0, 0)),   # fused conv weight
            pl.BlockSpec((1, Fn),       lambda g: (0, 0)),   # conv bias
            pl.BlockSpec((bblk * L, 1), lambda g: (g, 0)),   # segment-A mask
            pl.BlockSpec((bblk * L, 1), lambda g: (g, 0)),   # segment-B mask
            pl.BlockSpec((bblk * L, 1), lambda g: (g, 0)),   # segment-C mask
            pl.BlockSpec((bblk, Fn),    lambda g: (g, 0)),   # att_weight rows
            pl.BlockSpec((Fn, Tpad),    lambda g: (0, 0)),   # relation table^T
            pl.BlockSpec((bblk, Tpad),  lambda g: (g, 0)),   # relation bias rows
        ],
        out_specs=pl.BlockSpec((bblk, Tpad), lambda g: (g, 0)),
        scratch_shapes=[pltpu.VMEM((bblk * L, Fn), jnp.float32)],
    )

    out = pl.pallas_call(
        functools.partial(pcnn_att_kernel, bblk=bblk, seq_len=L),
        out_shape=jax.ShapeDtypeStruct((Bpad, Tpad), jnp.float32),
        grid_spec=grid_spec,
        compiler_params=pltpu.CompilerParams(
            dimension_semantics=("parallel",)),   # batch blocks are independent
    )(x2d, w2d, cb, mask_a, mask_b, mask_c, attw2d, relT, rbias2d)

    return out[:B, :T]


# -----------------------------------------------------------------------------
# Pure NumPy reference (mirrors the PyTorch forward; conv inputs rounded to
# bf16 to match the kernel's deliberate MXU-input quantisation).
# -----------------------------------------------------------------------------
def _bf16_round(x):
    return np.asarray(jnp.asarray(x, jnp.float32).astype(jnp.bfloat16).astype(jnp.float32))


def reference_forward(sentence, pos1, pos2,
                      word_t, p1_t, p2_t, rel_table,
                      conv_w, conv_b, att_w, rel_bias):
    sentence = np.asarray(sentence)
    pos1 = np.asarray(pos1)
    pos2 = np.asarray(pos2)
    word_t = np.asarray(word_t)
    p1_t = np.asarray(p1_t)
    p2_t = np.asarray(p2_t)
    rel_table = np.asarray(rel_table)
    conv_w = np.asarray(conv_w)
    conv_b = np.asarray(conv_b)
    att_w = np.asarray(att_w)
    rel_bias = np.asarray(rel_bias)

    B, L = sentence.shape
    Fn = conv_w.shape[0]

    embeds = np.concatenate(
        [word_t[sentence], p1_t[pos1], p2_t[pos2]], axis=2).astype(np.float32)
    embeds_q = _bf16_round(embeds)
    conv_wq = _bf16_round(conv_w)

    pad = np.pad(embeds_q, ((0, 0), (1, 1), (0, 0)))
    cnn = np.zeros((B, L, Fn), np.float32)
    for k in range(3):
        cnn += np.einsum('bld,fd->blf', pad[:, k:k + L, :],
                         conv_wq[:, 0, k, :]).astype(np.float32)
    cnn = np.maximum(cnn + conv_b[None, None, :], 0.0)                    # [B, L, F]

    def softmax(x, axis):
        x = x - x.max(axis=axis, keepdims=True)
        e = np.exp(x)
        return e / e.sum(axis=axis, keepdims=True)

    outs = []
    for i in range(B):
        e1 = np.nonzero(pos1[i] == 60)[0]
        e2 = np.nonzero(pos2[i] == 60)[0]
        if e1.min() < e2.min():
            m1, m2, m3, m4 = e1.min(), e1.max(), e2.min(), e2.max()
        else:
            m1, m2, m3, m4 = e2.min(), e2.max(), e1.min(), e1.max()
        a = cnn[i, :max(m1, 1), :].max(axis=0)
        b_ = cnn[i, m2:max(m3, m2 + 1), :].max(axis=0)
        c = cnn[i, m4:, :].max(axis=0)
        H = np.stack([a, b_, c], axis=1)                                  # [F, 3]
        M = np.tanh(H)
        sc = att_w[i] @ M                                                 # [1, 3]
        aw = softmax(sc, axis=1).T                                        # [3, 1]
        att_out = np.tanh(H @ aw)                                         # [F, 1]
        wei = rel_table @ att_out                                         # [T, 1]
        res = softmax(wei + rel_bias[i], axis=0)                          # [T, 1]
        outs.append(res[:, 0])
    return np.stack(outs)                                                 # [B, T]


# -----------------------------------------------------------------------------
if __name__ == "__main__":
    # config (small, consistent with the module's forward)
    B, L = 16, 16
    EMBEDDING_SIZE, EMBEDDING_DIM = 100, 32
    POS_SIZE, POS_DIM = 80, 8
    FILT_NUM, TAG_SIZE = 64, 8
    FEAT_DIM = EMBEDDING_DIM + 2 * POS_DIM  # 48

    key = jax.random.PRNGKey(0)
    ks = jax.random.split(key, 10)

    word_t = 0.5 * jax.random.normal(ks[0], (EMBEDDING_SIZE, EMBEDDING_DIM), jnp.float32)
    p1_t = 0.5 * jax.random.normal(ks[1], (POS_SIZE, POS_DIM), jnp.float32)
    p2_t = 0.5 * jax.random.normal(ks[2], (POS_SIZE, POS_DIM), jnp.float32)
    rel_table = 0.5 * jax.random.normal(ks[3], (TAG_SIZE, FILT_NUM), jnp.float32)
    conv_w = 0.1 * jax.random.normal(ks[4], (FILT_NUM, 1, 3, FEAT_DIM), jnp.float32)
    conv_b = 0.1 * jax.random.normal(ks[5], (FILT_NUM,), jnp.float32)
    att_w = jax.random.normal(ks[6], (B, 1, FILT_NUM), jnp.float32)
    rel_bias = jax.random.normal(ks[7], (B, TAG_SIZE, 1), jnp.float32)

    sentence = jax.random.randint(ks[8], (B, L), 0, EMBEDDING_SIZE, jnp.int32)
    # position ids in [0, 60) so that value 60 only marks entity tokens.
    pos1 = jax.random.randint(ks[9], (B, L), 0, 60, jnp.int32)
    pos2 = jax.random.randint(jax.random.fold_in(key, 123), (B, L), 0, 60, jnp.int32)
    # plant entity markers (value == 60) at deterministic, varied positions so
    # the e1-before-e2 / e2-before-e1 branches both get exercised.
    rows = jnp.arange(B)
    e1a = (3 * rows) % L
    e1b = (3 * rows + 2) % L
    e2a = (5 * rows + 7) % L
    e2b = (5 * rows + 11) % L
    pos1 = pos1.at[rows, e1a].set(60).at[rows, e1b].set(60)
    pos2 = pos2.at[rows, e2a].set(60).at[rows, e2b].set(60)

    params = (word_t, p1_t, p2_t, rel_table, conv_w, conv_b, att_w, rel_bias)

    out = pcnn_att_forward(sentence, pos1, pos2, *params)
    out = jax.block_until_ready(out)

    ref = reference_forward(sentence, pos1, pos2, *params)
    np.testing.assert_allclose(np.asarray(out), ref, rtol=5e-3, atol=5e-3)

    print("KERNEL_OK")
</pallas_src>

<mosaic_0001>
module attributes {stable_mosaic.version = 11 : i64} {
  func.func @pcnn_att_kernel(%arg0: i32, %arg1: memref<128x144xbf16, #tpu.memory_space<vmem>>, %arg2: memref<144x64xbf16, #tpu.memory_space<vmem>>, %arg3: memref<1x64xf32, #tpu.memory_space<vmem>>, %arg4: memref<128x1xf32, #tpu.memory_space<vmem>>, %arg5: memref<128x1xf32, #tpu.memory_space<vmem>>, %arg6: memref<128x1xf32, #tpu.memory_space<vmem>>, %arg7: memref<8x64xf32, #tpu.memory_space<vmem>>, %arg8: memref<64x128xf32, #tpu.memory_space<vmem>>, %arg9: memref<8x128xf32, #tpu.memory_space<vmem>>, %arg10: memref<8x128xf32, #tpu.memory_space<vmem>>, %arg11: memref<128x64xf32, #tpu.memory_space<vmem>>) attributes {dimension_semantics = [#tpu.dimension_semantics<parallel>], iteration_bounds = array<i64: 2>, scalar_prefetch = 0 : i64, scratch_operands = 1 : i64, tpu.core_type = #tpu.core_type<tc>, window_params = [{transform_indices = @transform_0, window_bounds = array<i64: 128, 144>}, {pipeline_mode = #tpu.pipeline_mode<synchronous>, transform_indices = @transform_1, window_bounds = array<i64: 144, 64>}, {pipeline_mode = #tpu.pipeline_mode<synchronous>, transform_indices = @transform_2, window_bounds = array<i64: 1, 64>}, {transform_indices = @transform_3, window_bounds = array<i64: 128, 1>}, {transform_indices = @transform_4, window_bounds = array<i64: 128, 1>}, {transform_indices = @transform_5, window_bounds = array<i64: 128, 1>}, {transform_indices = @transform_6, window_bounds = array<i64: 8, 64>}, {pipeline_mode = #tpu.pipeline_mode<synchronous>, transform_indices = @transform_7, window_bounds = array<i64: 64, 128>}, {transform_indices = @transform_8, window_bounds = array<i64: 8, 128>}, {transform_indices = @transform_9, window_bounds = array<i64: 8, 128>}]} {
    %c0 = arith.constant 0 : index
    %c0_0 = arith.constant 0 : index
    %0 = vector.load %arg1[%c0, %c0_0] : memref<128x144xbf16, #tpu.memory_space<vmem>>, vector<128x144xbf16>
    %c0_1 = arith.constant 0 : index
    %c0_2 = arith.constant 0 : index
    %1 = vector.load %arg2[%c0_1, %c0_2] : memref<144x64xbf16, #tpu.memory_space<vmem>>, vector<144x64xbf16>
    %cst = arith.constant dense<0.000000e+00> : vector<128x64xf32>
    %2 = tpu.matmul %0, %1, %cst {dimension_numbers = #tpu.dot_dimension_numbers<[1], [0], [0], [1], [0, 0, 1, 1], [], []>} : vector<128x144xbf16>, vector<144x64xbf16>, vector<128x64xf32> -> vector<128x64xf32>
    %c0_3 = arith.constant 0 : index
    %c0_4 = arith.constant 0 : index
    %3 = vector.load %arg3[%c0_3, %c0_4] : memref<1x64xf32, #tpu.memory_space<vmem>>, vector<1x64xf32>
    %4 = vector.broadcast %3 : vector<1x64xf32> to vector<128x64xf32>
    %5 = arith.addf %2, %4 : vector<128x64xf32>
    %cst_5 = arith.constant 0.000000e+00 : f32
    %6 = vector.broadcast %cst_5 : f32 to vector<128x64xf32>
    %7 = arith.maximumf %5, %6 : vector<128x64xf32>
    %c0_6 = arith.constant 0 : index
    %c0_7 = arith.constant 0 : index
    %8 = vector.load %arg11[%c0_6, %c0_7] : memref<128x64xf32, #tpu.memory_space<vmem>>, vector<128x64xf32>
    tpu.vector_store %arg11[%c0_6, %c0_7], %7 {strides = array<i32>} : memref<128x64xf32, #tpu.memory_space<vmem>>, vector<128x64xf32>,
    %c0_8 = arith.constant 0 : index
    %c0_9 = arith.constant 0 : index
    %9 = vector.load %arg11[%c0_8, %c0_9] : memref<128x64xf32, #tpu.memory_space<vmem>>, vector<128x64xf32>
    %c0_10 = arith.constant 0 : index
    %c0_11 = arith.constant 0 : index
    %10 = vector.load %arg4[%c0_10, %c0_11] : memref<128x1xf32, #tpu.memory_space<vmem>>, vector<128x1xf32>
    %11 = vector.broadcast %10 : vector<128x1xf32> to vector<128x64xf32>
    %12 = arith.mulf %9, %11 : vector<128x64xf32>
    %13 = vector.shape_cast %12 : vector<128x64xf32> to vector<8x16x64xf32>
    %cst_12 = arith.constant dense<0xFF800000> : vector<8x64xf32>
    %14 = vector.multi_reduction <maximumf>, %13, %cst_12 [1] : vector<8x16x64xf32> to vector<8x64xf32>
    %c0_13 = arith.constant 0 : index
    %c0_14 = arith.constant 0 : index
    %15 = vector.load %arg11[%c0_13, %c0_14] : memref<128x64xf32, #tpu.memory_space<vmem>>, vector<128x64xf32>
    %c0_15 = arith.constant 0 : index
    %c0_16 = arith.constant 0 : index
    %16 = vector.load %arg5[%c0_15, %c0_16] : memref<128x1xf32, #tpu.memory_space<vmem>>, vector<128x1xf32>
    %17 = vector.broadcast %16 : vector<128x1xf32> to vector<128x64xf32>
    %18 = arith.mulf %15, %17 : vector<128x64xf32>
    %19 = vector.shape_cast %18 : vector<128x64xf32> to vector<8x16x64xf32>
    %cst_17 = arith.constant dense<0xFF800000> : vector<8x64xf32>
    %20 = vector.multi_reduction <maximumf>, %19, %cst_17 [1] : vector<8x16x64xf32> to vector<8x64xf32>
    %c0_18 = arith.constant 0 : index
    %c0_19 = arith.constant 0 : index
    %21 = vector.load %arg11[%c0_18, %c0_19] : memref<128x64xf32, #tpu.memory_space<vmem>>, vector<128x64xf32>
    %c0_20 = arith.constant 0 : index
    %c0_21 = arith.constant 0 : index
    %22 = vector.load %arg6[%c0_20, %c0_21] : memref<128x1xf32, #tpu.memory_space<vmem>>, vector<128x1xf32>
    %23 = vector.broadcast %22 : vector<128x1xf32> to vector<128x64xf32>
    %24 = arith.mulf %21, %23 : vector<128x64xf32>
    %25 = vector.shape_cast %24 : vector<128x64xf32> to vector<8x16x64xf32>
    %cst_22 = arith.constant dense<0xFF800000> : vector<8x64xf32>
    %26 = vector.multi_reduction <maximumf>, %25, %cst_22 [1] : vector<8x16x64xf32> to vector<8x64xf32>
    %c0_23 = arith.constant 0 : index
    %c0_24 = arith.constant 0 : index
    %27 = vector.load %arg7[%c0_23, %c0_24] : memref<8x64xf32, #tpu.memory_space<vmem>>, vector<8x64xf32>
    %28 = math.tanh %14 : vector<8x64xf32>
    %29 = arith.mulf %28, %27 : vector<8x64xf32>
    %cst_25 = arith.constant dense<0.000000e+00> : vector<8xf32>
    %30 = vector.multi_reduction <add>, %29, %cst_25 [1] : vector<8x64xf32> to vector<8xf32>
    %31 = vector.shape_cast %30 : vector<8xf32> to vector<8x1xf32>
    %32 = math.tanh %20 : vector<8x64xf32>
    %33 = arith.mulf %32, %27 : vector<8x64xf32>
    %cst_26 = arith.constant dense<0.000000e+00> : vector<8xf32>
    %34 = vector.multi_reduction <add>, %33, %cst_26 [1] : vector<8x64xf32> to vector<8xf32>
    %35 = vector.shape_cast %34 : vector<8xf32> to vector<8x1xf32>
    %36 = math.tanh %26 : vector<8x64xf32>
    %37 = arith.mulf %36, %27 : vector<8x64xf32>
    %cst_27 = arith.constant dense<0.000000e+00> : vector<8xf32>
    %38 = vector.multi_reduction <add>, %37, %cst_27 [1] : vector<8x64xf32> to vector<8xf32>
    %39 = vector.shape_cast %38 : vector<8xf32> to vector<8x1xf32>
    %40 = arith.maximumf %31, %35 : vector<8x1xf32>
    %41 = arith.maximumf %40, %39 : vector<8x1xf32>
    %42 = arith.subf %31, %41 : vector<8x1xf32>
    %43 = math.exp %42 : vector<8x1xf32>
    %44 = arith.subf %35, %41 : vector<8x1xf32>
    %45 = math.exp %44 : vector<8x1xf32>
    %46 = arith.subf %39, %41 : vector<8x1xf32>
    %47 = math.exp %46 : vector<8x1xf32>
    %48 = arith.addf %43, %45 : vector<8x1xf32>
    %49 = arith.addf %48, %47 : vector<8x1xf32>
    %50 = tpu.reciprocal %49 {approx = true} : vector<8x1xf32> -> vector<8x1xf32>
    %51 = vector.broadcast %43 : vector<8x1xf32> to vector<8x64xf32>
    %52 = arith.mulf %14, %51 : vector<8x64xf32>
    %53 = vector.broadcast %45 : vector<8x1xf32> to vector<8x64xf32>
    %54 = arith.mulf %20, %53 : vector<8x64xf32>
    %55 = arith.addf %52, %54 : vector<8x64xf32>
    %56 = vector.broadcast %47 : vector<8x1xf32> to vector<8x64xf32>
    %57 = arith.mulf %26, %56 : vector<8x64xf32>
    %58 = arith.addf %55, %57 : vector<8x64xf32>
    %59 = vector.broadcast %50 : vector<8x1xf32> to vector<8x64xf32>
    %60 = arith.mulf %58, %59 : vector<8x64xf32>
    %61 = math.tanh %60 : vector<8x64xf32>
    %c0_28 = arith.constant 0 : index
    %c0_29 = arith.constant 0 : index
    %62 = vector.load %arg8[%c0_28, %c0_29] : memref<64x128xf32, #tpu.memory_space<vmem>>, vector<64x128xf32>
    %cst_30 = arith.constant dense<0.000000e+00> : vector<8x128xf32>
    %63 = tpu.matmul %61, %62, %cst_30 {dimension_numbers = #tpu.dot_dimension_numbers<[1], [0], [0], [1], [0, 0, 1, 1], [], []>} : vector<8x64xf32>, vector<64x128xf32>, vector<8x128xf32> -> vector<8x128xf32>
    %c0_31 = arith.constant 0 : index
    %c0_32 = arith.constant 0 : index
    %64 = vector.load %arg9[%c0_31, %c0_32] : memref<8x128xf32, #tpu.memory_space<vmem>>, vector<8x128xf32>
    %65 = arith.addf %63, %64 : vector<8x128xf32>
    %cst_33 = arith.constant dense<0xFF800000> : vector<8xf32>
    %66 = vector.multi_reduction <maximumf>, %65, %cst_33 [1] : vector<8x128xf32> to vector<8xf32>
    %67 = vector.shape_cast %66 : vector<8xf32> to vector<8x1xf32>
    %68 = vector.broadcast %67 : vector<8x1xf32> to vector<8x128xf32>
    %69 = arith.subf %65, %68 : vector<8x128xf32>
    %70 = math.exp %69 : vector<8x128xf32>
    %cst_34 = arith.constant dense<0.000000e+00> : vector<8xf32>
    %71 = vector.multi_reduction <add>, %70, %cst_34 [1] : vector<8x128xf32> to vector<8xf32>
    %72 = vector.shape_cast %71 : vector<8xf32> to vector<8x1xf32>
    %73 = tpu.reciprocal %72 {approx = true} : vector<8x1xf32> -> vector<8x1xf32>
    %74 = vector.broadcast %73 : vector<8x1xf32> to vector<8x128xf32>
    %75 = arith.mulf %70, %74 : vector<8x128xf32>
    %c0_35 = arith.constant 0 : index
    %c0_36 = arith.constant 0 : index
    %76 = vector.load %arg10[%c0_35, %c0_36] : memref<8x128xf32, #tpu.memory_space<vmem>>, vector<8x128xf32>
    tpu.vector_store %arg10[%c0_35, %c0_36], %75 {strides = array<i32>} : memref<8x128xf32, #tpu.memory_space<vmem>>, vector<8x128xf32>,
    return
  }
  func.func @transform_0(%arg0: i32) -> (i32, i32) {
    %c0_i32 = arith.constant 0 : i32
    %c0_i32_0 = arith.constant 0 : i32
    return %arg0, %c0_i32 : i32, i32
  }
  func.func @transform_1(%arg0: i32) -> (i32, i32) {
    %c0_i32 = arith.constant 0 : i32
    %c0_i32_0 = arith.constant 0 : i32
    %c0_i32_1 = arith.constant 0 : i32
    return %c0_i32, %c0_i32_0 : i32, i32
  }
  func.func @transform_2(%arg0: i32) -> (i32, i32) {
    %c0_i32 = arith.constant 0 : i32
    %c0_i32_0 = arith.constant 0 : i32
    %c0_i32_1 = arith.constant 0 : i32
    return %c0_i32, %c0_i32_0 : i32, i32
  }
  func.func @transform_3(%arg0: i32) -> (i32, i32) {
    %c0_i32 = arith.constant 0 : i32
    %c0_i32_0 = arith.constant 0 : i32
    return %arg0, %c0_i32 : i32, i32
  }
  func.func @transform_4(%arg0: i32) -> (i32, i32) {
    %c0_i32 = arith.constant 0 : i32
    %c0_i32_0 = arith.constant 0 : i32
    return %arg0, %c0_i32 : i32, i32
  }
  func.func @transform_5(%arg0: i32) -> (i32, i32) {
    %c0_i32 = arith.constant 0 : i32
    %c0_i32_0 = arith.constant 0 : i32
    return %arg0, %c0_i32 : i32, i32
  }
  func.func @transform_6(%arg0: i32) -> (i32, i32) {
    %c0_i32 = arith.constant 0 : i32
    %c0_i32_0 = arith.constant 0 : i32
    return %arg0, %c0_i32 : i32, i32
  }
  func.func @transform_7(%arg0: i32) -> (i32, i32) {
    %c0_i32 = arith.constant 0 : i32
    %c0_i32_0 = arith.constant 0 : i32
    %c0_i32_1 = arith.constant 0 : i32
    return %c0_i32, %c0_i32_0 : i32, i32
  }
  func.func @transform_8(%arg0: i32) -> (i32, i32) {
    %c0_i32 = arith.constant 0 : i32
    %c0_i32_0 = arith.constant 0 : i32
    return %arg0, %c0_i32 : i32, i32
  }
  func.func @transform_9(%arg0: i32) -> (i32, i32) {
    %c0_i32 = arith.constant 0 : i32
    %c0_i32_0 = arith.constant 0 : i32
    return %arg0, %c0_i32 : i32, i32
  }
}

</mosaic_0001>

<llo_original>
// kernel: pcnn_att_forward.1
$region0: #{pcnn_att_forward.1}
  #allocation0 [shape = 'u32[]', space=smem, size = 0x4, offset = 0x4, fixed_abs, tag = 'smem constant byte address 0x4 - core index']
  #allocation1 [shape = 'u32[72,128]{1,0:T(1,128)}', space=vmem, size = 0x9000, scoped, tag = 'internal scratch']
  #allocation2 [shape = 'f32[128,64]{1,0:T(8,128)}', space=vmem, size = 0x10000, scoped, tag = 'scratch operand']
  %s0 = inlined_call_operand.vmem [shape: bf16[256,144], index: 0, kind: input, shape index: {}]
  %s1 = inlined_call_operand.vmem [shape: bf16[144,64], index: 1, kind: input, shape index: {}]
  %s2 = inlined_call_operand.vmem [shape: f32[1,64], index: 2, kind: input, shape index: {}]
  %s3 = inlined_call_operand.vmem [shape: f32[256,1], index: 3, kind: input, shape index: {}]
  %s4 = inlined_call_operand.vmem [shape: f32[256,1], index: 4, kind: input, shape index: {}]
  %s5 = inlined_call_operand.vmem [shape: f32[256,1], index: 5, kind: input, shape index: {}]
  %s6 = inlined_call_operand.vmem [shape: f32[16,64], index: 6, kind: input, shape index: {}]
  %s7 = inlined_call_operand.vmem [shape: f32[64,128], index: 7, kind: input, shape index: {}]
  %s8 = inlined_call_operand.vmem [shape: f32[16,128], index: 8, kind: input, shape index: {}]
  %s9 = inlined_call_operand.vmem [shape: f32[16,128], index: 9, kind: output, shape index: {}]
  %s10 = sld [smem:[#allocation0]]
  $region69: #{pcnn_att_forward.1} parent=0
    _
  %s12 = ssub.s32 1, %s10
  %s13 = scalar_select 0, %s12, %s10
  loop: start=0, step=1, limit=4
  $region2: #{pcnn_att_forward.1} parent=0 // loop_pre_header
    _
  $region3: #{pcnn_att_forward.1} parent=0 // loop_header
    %s15 = sphi 0, %s19
    %p16 = scmp.ge.s32.totalorder %s15, 4
    %s25 = sphi 0, %s27
    %s28 = sphi 0, %s25
    %s29 = sphi 0, %s28
    %s45 = sphi 0, %s29
    %s49 = sphi 0, %s49
    %s51 = sphi 0, %s49
    %s52 = sphi 0, %s51
    %s66 = sphi 0, %s52
    %s70 = sphi 0, %s70
    %s72 = sphi 0, %s70
    %s73 = sphi 0, %s72
    %s87 = sphi 0, %s73
    %s93 = sphi 0, %s95
    %s96 = sphi 0, %s93
    %s97 = sphi 0, %s96
    %s113 = sphi 0, %s97
    %s119 = sphi 0, %s121
    %s122 = sphi 0, %s119
    %s123 = sphi 0, %s122
    %s139 = sphi 0, %s123
    %s145 = sphi 0, %s147
    %s148 = sphi 0, %s145
    %s149 = sphi 0, %s148
    %s165 = sphi 0, %s149
    %s171 = sphi 0, %s173
    %s174 = sphi 0, %s171
    %s175 = sphi 0, %s174
    %s191 = sphi 0, %s175
    %s195 = sphi 0, %s195
    %s197 = sphi 0, %s195
    %s198 = sphi 0, %s197
    %s212 = sphi 0, %s198
    %s218 = sphi 0, %s220
    %s221 = sphi 0, %s218
    %s222 = sphi 0, %s221
    %s238 = sphi 0, %s222
    %s244 = sphi 0, %s246
    %s247 = sphi 0, %s244
    %s248 = sphi 0, %s247
    %s264 = sphi 0, %s248
  $region4: #{pcnn_att_forward.1} parent=0 // loop_header_branch
    %18 = sbr.rel (%p16) target = $region8
  $region5: #{pcnn_att_forward.1} parent=0 // loop_body
    %s20 = ssub.s32 %s15, 1
    %s21 = ssub.s32 %s15, 2
    %s22 = sadd.s32 %s15, 1
    %s23 = ssub.s32 %s15, %s22
    %p24 = scmp.eq.s32.totalorder %s23, 0
    %s26 = sadd.s32 %s25, 1
    %s27 = scalar_select %p24, %s25, %s26
    %p30 = pneg %p24
    %p31 = scmp.eq.s32.totalorder %s15, 1
    %p32 = por %p30, %p31
    %p33 = scmp.ne.s32.totalorder %s25, %s28
    %p34 = scmp.eq.s32.totalorder %s15, 0
    %p35 = por %p33, %p34
    %p36 = scmp.ne.s32.totalorder %s25, %s28
    %p37 = scmp.eq.s32.totalorder %s20, 1
    %p38 = por %p36, %p37
    %p39 = scmp.ne.s32.totalorder %s28, %s29
    %p40 = scmp.eq.s32.totalorder %s20, 0
    %p41 = por %p39, %p40
    %p42 = scmp.ne.s32.totalorder %s28, %s29
    %p43 = scmp.eq.s32.totalorder %s21, 1
    %p44 = por %p42, %p43
    %p46 = scmp.ne.s32.totalorder %s29, %s45
    %p47 = scmp.eq.s32.totalorder %s21, 0
    %p48 = por %p46, %p47
    %s50 = sadd.s32 %s49, 1
    %p53 = scmp.eq.s32.totalorder %s15, 1
    %p54 = scmp.ne.s32.totalorder %s49, %s51
    %p55 = scmp.eq.s32.totalorder %s15, 0
    %p56 = por %p54, %p55
    %p57 = scmp.ne.s32.totalorder %s49, %s51
    %p58 = scmp.eq.s32.totalorder %s20, 1
    %p59 = por %p57, %p58
    %p60 = scmp.ne.s32.totalorder %s51, %s52
    %p61 = scmp.eq.s32.totalorder %s20, 0
    %p62 = por %p60, %p61
    %p63 = scmp.ne.s32.totalorder %s51, %s52
    %p64 = scmp.eq.s32.totalorder %s21, 1
    %p65 = por %p63, %p64
    %p67 = scmp.ne.s32.totalorder %s52, %s66
    %p68 = scmp.eq.s32.totalorder %s21, 0
    %p69 = por %p67, %p68
    %s71 = sadd.s32 %s70, 1
    %p74 = scmp.eq.s32.totalorder %s15, 1
    %p75 = scmp.ne.s32.totalorder %s70, %s72
    %p76 = scmp.eq.s32.totalorder %s15, 0
    %p77 = por %p75, %p76
    %p78 = scmp.ne.s32.totalorder %s70, %s72
    %p79 = scmp.eq.s32.totalorder %s20, 1
    %p80 = por %p78, %p79
    %p81 = scmp.ne.s32.totalorder %s72, %s73
    %p82 = scmp.eq.s32.totalorder %s20, 0
    %p83 = por %p81, %p82
    %p84 = scmp.ne.s32.totalorder %s72, %s73
    %p85 = scmp.eq.s32.totalorder %s21, 1
    %p86 = por %p84, %p85
    %p88 = scmp.ne.s32.totalorder %s73, %s87
    %p89 = scmp.eq.s32.totalorder %s21, 0
    %p90 = por %p88, %p89
    %s91 = ssub.s32 %s15, %s22
    %p92 = scmp.eq.s32.totalorder %s91, 0
    %s94 = sadd.s32 %s93, 1
    %s95 = scalar_select %p92, %s93, %s94
    %p98 = pneg %p92
    %p99 = scmp.eq.s32.totalorder %s15, 1
    %p100 = por %p98, %p99
    %p101 = scmp.ne.s32.totalorder %s93, %s96
    %p102 = scmp.eq.s32.totalorder %s15, 0
    %p103 = por %p101, %p102
    %p104 = scmp.ne.s32.totalorder %s93, %s96
    %p105 = scmp.eq.s32.totalorder %s20, 1
    %p106 = por %p104, %p105
    %p107 = scmp.ne.s32.totalorder %s96, %s97
    %p108 = scmp.eq.s32.totalorder %s20, 0
    %p109 = por %p107, %p108
    %p110 = scmp.ne.s32.totalorder %s96, %s97
    %p111 = scmp.eq.s32.totalorder %s21, 1
    %p112 = por %p110, %p111
    %p114 = scmp.ne.s32.totalorder %s97, %s113
    %p115 = scmp.eq.s32.totalorder %s21, 0
    %p116 = por %p114, %p115
    %s117 = ssub.s32 %s15, %s22
    %p118 = scmp.eq.s32.totalorder %s117, 0
    %s120 = sadd.s32 %s119, 1
    %s121 = scalar_select %p118, %s119, %s120
    %p124 = pneg %p118
    %p125 = scmp.eq.s32.totalorder %s15, 1
    %p126 = por %p124, %p125
    %p127 = scmp.ne.s32.totalorder %s119, %s122
    %p128 = scmp.eq.s32.totalorder %s15, 0
    %p129 = por %p127, %p128
    %p130 = scmp.ne.s32.totalorder %s119, %s122
    %p131 = scmp.eq.s32.totalorder %s20, 1
    %p132 = por %p130, %p131
    %p133 = scmp.ne.s32.totalorder %s122, %s123
    %p134 = scmp.eq.s32.totalorder %s20, 0
    %p135 = por %p133, %p134
    %p136 = scmp.ne.s32.totalorder %s122, %s123
    %p137 = scmp.eq.s32.totalorder %s21, 1
    %p138 = por %p136, %p137
    %p140 = scmp.ne.s32.totalorder %s123, %s139
    %p141 = scmp.eq.s32.totalorder %s21, 0
    %p142 = por %p140, %p141
    %s143 = ssub.s32 %s15, %s22
    %p144 = scmp.eq.s32.totalorder %s143, 0
    %s146 = sadd.s32 %s145, 1
    %s147 = scalar_select %p144, %s145, %s146
    %p150 = pneg %p144
    %p151 = scmp.eq.s32.totalorder %s15, 1
    %p152 = por %p150, %p151
    %p153 = scmp.ne.s32.totalorder %s145, %s148
    %p154 = scmp.eq.s32.totalorder %s15, 0
    %p155 = por %p153, %p154
    %p156 = scmp.ne.s32.totalorder %s145, %s148
    %p157 = scmp.eq.s32.totalorder %s20, 1
    %p158 = por %p156, %p157
    %p159 = scmp.ne.s32.totalorder %s148, %s149
    %p160 = scmp.eq.s32.totalorder %s20, 0
    %p161 = por %p159, %p160
    %p162 = scmp.ne.s32.totalorder %s148, %s149
    %p163 = scmp.eq.s32.totalorder %s21, 1
    %p164 = por %p162, %p163
    %p166 = scmp.ne.s32.totalorder %s149, %s165
    %p167 = scmp.eq.s32.totalorder %s21, 0
    %p168 = por %p166, %p167
    %s169 = ssub.s32 %s15, %s22
    %p170 = scmp.eq.s32.totalorder %s169, 0
    %s172 = sadd.s32 %s171, 1
    %s173 = scalar_select %p170, %s171, %s172
    %p176 = pneg %p170
    %p177 = scmp.eq.s32.totalorder %s15, 1
    %p178 = por %p176, %p177
    %p179 = scmp.ne.s32.totalorder %s171, %s174
    %p180 = scmp.eq.s32.totalorder %s15, 0
    %p181 = por %p179, %p180
    %p182 = scmp.ne.s32.totalorder %s171, %s174
    %p183 = scmp.eq.s32.totalorder %s20, 1
    %p184 = por %p182, %p183
    %p185 = scmp.ne.s32.totalorder %s174, %s175
    %p186 = scmp.eq.s32.totalorder %s20, 0
    %p187 = por %p185, %p186
    %p188 = scmp.ne.s32.totalorder %s174, %s175
    %p189 = scmp.eq.s32.totalorder %s21, 1
    %p190 = por %p188, %p189
    %p192 = scmp.ne.s32.totalorder %s175, %s191
    %p193 = scmp.eq.s32.totalorder %s21, 0
    %p194 = por %p192, %p193
    %s196 = sadd.s32 %s195, 1
    %p199 = scmp.eq.s32.totalorder %s15, 1
    %p200 = scmp.ne.s32.totalorder %s195, %s197
    %p201 = scmp.eq.s32.totalorder %s15, 0
    %p202 = por %p200, %p201
    %p203 = scmp.ne.s32.totalorder %s195, %s197
    %p204 = scmp.eq.s32.totalorder %s20, 1
    %p205 = por %p203, %p204
    %p206 = scmp.ne.s32.totalorder %s197, %s198
    %p207 = scmp.eq.s32.totalorder %s20, 0
    %p208 = por %p206, %p207
    %p209 = scmp.ne.s32.totalorder %s197, %s198
    %p210 = scmp.eq.s32.totalorder %s21, 1
    %p211 = por %p209, %p210
    %p213 = scmp.ne.s32.totalorder %s198, %s212
    %p214 = scmp.eq.s32.totalorder %s21, 0
    %p215 = por %p213, %p214
    %s216 = ssub.s32 %s15, %s22
    %p217 = scmp.eq.s32.totalorder %s216, 0
    %s219 = sadd.s32 %s218, 1
    %s220 = scalar_select %p217, %s218, %s219
    %p223 = pneg %p217
    %p224 = scmp.eq.s32.totalorder %s15, 1
    %p225 = por %p223, %p224
    %p226 = scmp.ne.s32.totalorder %s218, %s221
    %p227 = scmp.eq.s32.totalorder %s15, 0
    %p228 = por %p226, %p227
    %p229 = scmp.ne.s32.totalorder %s218, %s221
    %p230 = scmp.eq.s32.totalorder %s20, 1
    %p231 = por %p229, %p230
    %p232 = scmp.ne.s32.totalorder %s221, %s222
    %p233 = scmp.eq.s32.totalorder %s20, 0
    %p234 = por %p232, %p233
    %p235 = scmp.ne.s32.totalorder %s221, %s222
    %p236 = scmp.eq.s32.totalorder %s21, 1
    %p237 = por %p235, %p236
    %p239 = scmp.ne.s32.totalorder %s222, %s238
    %p240 = scmp.eq.s32.totalorder %s21, 0
    %p241 = por %p239, %p240
    %s242 = ssub.s32 %s15, %s22
    %p243 = scmp.eq.s32.totalorder %s242, 0
    %s245 = sadd.s32 %s244, 1
    %s246 = scalar_select %p243, %s244, %s245
    %p249 = pneg %p243
    %p250 = scmp.eq.s32.totalorder %s15, 1
    %p251 = por %p249, %p250
    %p252 = scmp.ne.s32.totalorder %s244, %s247
    %p253 = scmp.eq.s32.totalorder %s15, 0
    %p254 = por %p252, %p253
    %p255 = scmp.ne.s32.totalorder %s244, %s247
    %p256 = scmp.eq.s32.totalorder %s20, 1
    %p257 = por %p255, %p256
    %p258 = scmp.ne.s32.totalorder %s247, %s248
    %p259 = scmp.eq.s32.totalorder %s20, 0
    %p260 = por %p258, %p259
    %p261 = scmp.ne.s32.totalorder %s247, %s248
    %p262 = scmp.eq.s32.totalorder %s21, 1
    %p263 = por %p261, %p262
    %p265 = scmp.ne.s32.totalorder %s248, %s264
    %p266 = scmp.eq.s32.totalorder %s21, 0
    %p267 = por %p265, %p266
    %p268 = scmp.le.s32.totalorder 1, %s15
    %p269 = scmp.lt.s32.totalorder %s15, 3
    %p270 = pnand %p268, %p269
    %p271 = pneg %p270
    // Predicated region
    $region9: #{pcnn_att_forward.1} parent=5 // pred_check
      _
    $region10: #{pcnn_att_forward.1} parent=5 // pred_check_branch
      %273 = sbr.rel (%p270) target = $region12
    $region11: #{pcnn_att_forward.1} parent=5 // pred_region
      %s274 = ssub.s32 %s15, 1
      // Predicated region
      $region13: #{pcnn_att_forward.1} parent=11 // pred_check
        %p275 = pneg %p62
      $region14: #{pcnn_att_forward.1} parent=11 // pred_check_branch
        %277 = sbr.rel (%p275) target = $region16
      $region15: #{pcnn_att_forward.1} parent=11 // pred_region
        _
      $region16: #{pcnn_att_forward.1} parent=11 // pred_fallthru
        _
      // Predicated region
      $region17: #{pcnn_att_forward.1} parent=11 // pred_check
        %p278 = pneg %p83
      $region18: #{pcnn_att_forward.1} parent=11 // pred_check_branch
        %280 = sbr.rel (%p278) target = $region20
      $region19: #{pcnn_att_forward.1} parent=11 // pred_region
        _
      $region20: #{pcnn_att_forward.1} parent=11 // pred_fallthru
        _
      // Predicated region
      $region21: #{pcnn_att_forward.1} parent=11 // pred_check
        %p281 = pneg %p208
      $region22: #{pcnn_att_forward.1} parent=11 // pred_check_branch
        %283 = sbr.rel (%p281) target = $region24
      $region23: #{pcnn_att_forward.1} parent=11 // pred_region
        _
      $region24: #{pcnn_att_forward.1} parent=11 // pred_fallthru
        _
    $region12: #{pcnn_att_forward.1} parent=5 // pred_fallthru
      _
    %p284 = scmp.lt.s32.totalorder %s15, 2
    // Predicated region
    $region25: #{pcnn_att_forward.1} parent=5 // pred_check
      %p285 = pneg %p284
    $region26: #{pcnn_att_forward.1} parent=5 // pred_check_branch
      %287 = sbr.rel (%p285) target = $region28
    $region27: #{pcnn_att_forward.1} parent=5 // pred_region
      // Predicated region
      $region29: #{pcnn_att_forward.1} parent=27 // pred_check
        %p288 = pneg %p35
      $region30: #{pcnn_att_forward.1} parent=27 // pred_check_branch
        %290 = sbr.rel (%p288) target = $region32
      $region31: #{pcnn_att_forward.1} parent=27 // pred_region
        %s291 = smul.u32 16, %s15
        %p292 = scmp.lt.s32.totalorder %s291, 31
        %s293 = scalar_select %p292, %s291, 31
        %s294 = smul.addr %s293, 2
        %s295 = smul.addr %s294, 4
        %s296 = scalar_lea.vmem %s0, %s295
        %s297 = smul.u32 16, %s15
      $region32: #{pcnn_att_forward.1} parent=27 // pred_fallthru
        _
      // Predicated region
      $region33: #{pcnn_att_forward.1} parent=27 // pred_check
        %p298 = pneg %p103
      $region34: #{pcnn_att_forward.1} parent=27 // pred_check_branch
        %300 = sbr.rel (%p298) target = $region36
      $region35: #{pcnn_att_forward.1} parent=27 // pred_region
        %s301 = smul.u32 16, %s15
        %p302 = scmp.lt.s32.totalorder %s301, 31
        %s303 = scalar_select %p302, %s301, 31
        %s304 = smul.addr %s303, 8
        %s305 = scalar_lea.vmem %s3, %s304
        %s306 = smul.u32 16, %s15
      $region36: #{pcnn_att_forward.1} parent=27 // pred_fallthru
        _
      // Predicated region
      $region37: #{pcnn_att_forward.1} parent=27 // pred_check
        %p307 = pneg %p129
      $region38: #{pcnn_att_forward.1} parent=27 // pred_check_branch
        %309 = sbr.rel (%p307) target = $region40
      $region39: #{pcnn_att_forward.1} parent=27 // pred_region
        %s310 = smul.u32 16, %s15
        %p311 = scmp.lt.s32.totalorder %s310, 31
        %s312 = scalar_select %p311, %s310, 31
        %s313 = smul.addr %s312, 8
        %s314 = scalar_lea.vmem %s4, %s313
        %s315 = smul.u32 16, %s15
      $region40: #{pcnn_att_forward.1} parent=27 // pred_fallthru
        _
      // Predicated region
      $region41: #{pcnn_att_forward.1} parent=27 // pred_check
        %p316 = pneg %p155
      $region42: #{pcnn_att_forward.1} parent=27 // pred_check_branch
        %318 = sbr.rel (%p316) target = $region44
      $region43: #{pcnn_att_forward.1} parent=27 // pred_region
        %s319 = smul.u32 16, %s15
        %p320 = scmp.lt.s32.totalorder %s319, 31
        %s321 = scalar_select %p320, %s319, 31
        %s322 = smul.addr %s321, 8
        %s323 = scalar_lea.vmem %s5, %s322
        %s324 = smul.u32 16, %s15
      $region44: #{pcnn_att_forward.1} parent=27 // pred_fallthru
        _
      // Predicated region
      $region45: #{pcnn_att_forward.1} parent=27 // pred_check
        %p325 = pneg %p181
      $region46: #{pcnn_att_forward.1} parent=27 // pred_check_branch
        %327 = sbr.rel (%p325) target = $region48
      $region47: #{pcnn_att_forward.1} parent=27 // pred_region
        %p328 = scmp.lt.s32.totalorder %s15, 1
        %s329 = scalar_select %p328, %s15, 1
        %s330 = smul.addr %s329, 8
        %s331 = scalar_lea.vmem %s6, %s330
      $region48: #{pcnn_att_forward.1} parent=27 // pred_fallthru
        _
      // Predicated region
      $region49: #{pcnn_att_forward.1} parent=27 // pred_check
        %p332 = pneg %p228
      $region50: #{pcnn_att_forward.1} parent=27 // pred_check_branch
        %334 = sbr.rel (%p332) target = $region52
      $region51: #{pcnn_att_forward.1} parent=27 // pred_region
        %p335 = scmp.lt.s32.totalorder %s15, 1
        %s336 = scalar_select %p335, %s15, 1
        %s337 = smul.addr %s336, 8
        %s338 = scalar_lea.vmem %s8, %s337
      $region52: #{pcnn_att_forward.1} parent=27 // pred_fallthru
        _
    $region28: #{pcnn_att_forward.1} parent=5 // pred_fallthru
      _
    %p339 = scmp.le.s32.totalorder 1, %s15
    %p340 = scmp.lt.s32.totalorder %s15, 3
    %p341 = pnand %p339, %p340
    %p342 = pneg %p341
    // Predicated region
    $region53: #{pcnn_att_forward.1} parent=5 // pred_check
      _
    $region54: #{pcnn_att_forward.1} parent=5 // pred_check_branch
      %344 = sbr.rel (%p341) target = $region56
    $region55: #{pcnn_att_forward.1} parent=5 // pred_region
      %s345 = ssub.s32 %s15, 1
      %s346 = smul.u32 16, %s20
      %p347 = scmp.lt.s32.totalorder %s346, 31
      %s348 = scalar_select %p347, %s346, 31
      %s349 = smul.addr %s348, 2
      %s350 = smul.addr %s349, 4
      %s351 = scalar_lea.vmem %s0, %s350
      %p352 = pneg %p41
      %p353 = pneg %p38
      %p354 = pneg %p62
      %p355 = pneg %p59
      %p356 = pneg %p83
      %p357 = pneg %p80
      %s358 = smul.u32 16, %s20
      %p359 = scmp.lt.s32.totalorder %s358, 31
      %s360 = scalar_select %p359, %s358, 31
      %s361 = smul.addr %s360, 8
      %s362 = scalar_lea.vmem %s3, %s361
      %p363 = pneg %p109
      %p364 = pneg %p106
      %s365 = smul.u32 16, %s20
      %p366 = scmp.lt.s32.totalorder %s365, 31
      %s367 = scalar_select %p366, %s365, 31
      %s368 = smul.addr %s367, 8
      %s369 = scalar_lea.vmem %s4, %s368
      %p370 = pneg %p135
      %p371 = pneg %p132
      %s372 = smul.u32 16, %s20
      %p373 = scmp.lt.s32.totalorder %s372, 31
      %s374 = scalar_select %p373, %s372, 31
      %s375 = smul.addr %s374, 8
      %s376 = scalar_lea.vmem %s5, %s375
      %p377 = pneg %p161
      %p378 = pneg %p158
      %p379 = scmp.lt.s32.totalorder %s20, 1
      %s380 = scalar_select %p379, %s20, 1
      %s381 = smul.addr %s380, 8
      %s382 = scalar_lea.vmem %s6, %s381
      %p383 = pneg %p187
      %p384 = pneg %p184
      %p385 = pneg %p208
      %p386 = pneg %p205
      %p387 = scmp.lt.s32.totalorder %s20, 1
      %s388 = scalar_select %p387, %s20, 1
      %s389 = smul.addr %s388, 8
      %s390 = scalar_lea.vmem %s8, %s389
      %p391 = pneg %p234
      %p392 = pneg %p231
      %p393 = pneg %p260
      %p394 = pneg %p257
      %p395 = scmp.lt.s32.totalorder %s20, 1
      %s396 = scalar_select %p395, %s20, 1
      %s397 = smul.addr %s396, 8
      %s398 = scalar_lea.vmem %s9, %s397
      %s399 = smul.u32 16, %s20
      %p400 = scmp.lt.s32.totalorder %s399, 31
      %s401 = scalar_select %p400, %s399, 31
      %s402 = smul.addr %s401, 2
      %s403 = smul.addr %s402, 4
      %s404 = scalar_lea.vmem %s0, %s403
      %s405 = smul.u32 16, %s20
      %s406 = smul.u32 16, %s20
      %p407 = scmp.lt.s32.totalorder %s406, 31
      %s408 = scalar_select %p407, %s406, 31
      %s409 = smul.addr %s408, 8
      %s410 = scalar_lea.vmem %s3, %s409
      %s411 = smul.u32 16, %s20
      %s412 = smul.u32 16, %s20
      %p413 = scmp.lt.s32.totalorder %s412, 31
      %s414 = scalar_select %p413, %s412, 31
      %s415 = smul.addr %s414, 8
      %s416 = scalar_lea.vmem %s4, %s415
      %s417 = smul.u32 16, %s20
      %s418 = smul.u32 16, %s20
      %p419 = scmp.lt.s32.totalorder %s418, 31
      %s420 = scalar_select %p419, %s418, 31
      %s421 = smul.addr %s420, 8
      %s422 = scalar_lea.vmem %s5, %s421
      %s423 = smul.u32 16, %s20
      %p424 = scmp.lt.s32.totalorder %s20, 1
      %s425 = scalar_select %p424, %s20, 1
      %s426 = smul.addr %s425, 8
      %s427 = scalar_lea.vmem %s6, %s426
      %p428 = scmp.lt.s32.totalorder %s20, 1
      %s429 = scalar_select %p428, %s20, 1
      %s430 = smul.addr %s429, 8
      %s431 = scalar_lea.vmem %s8, %s430
      %p432 = scmp.lt.s32.totalorder %s20, 1
      %s433 = scalar_select %p432, %s20, 1
      %s434 = smul.addr %s433, 8
      %s435 = scalar_lea.vmem %s9, %s434
      %v437 = vld [vmem:[%s404] sm:$0xff]
      %v438 = vld [vmem:[%s404 + $0x8] sm:$0xff]
      %v439 = vld [vmem:[%s404 + $0x10] sm:$0xff]
      %v440 = vld [vmem:[%s404 + $0x18] sm:$0xff]
      %v441 = vld [vmem:[%s404 + $0x20] sm:$0xff]
      %v442 = vld [vmem:[%s404 + $0x28] sm:$0xff]
      %v443 = vld [vmem:[%s404 + $0x30] sm:$0xff]
      %v444 = vld [vmem:[%s404 + $0x38] sm:$0xff]
      %v445 = vld [vmem:[%s404 + $0x40] sm:$0xff]
      %v446 = vld [vmem:[%s404 + $0x48] sm:$0xff]
      %v447 = vld [vmem:[%s404 + $0x50] sm:$0xff]
      %v448 = vld [vmem:[%s404 + $0x58] sm:$0xff]
      %v449 = vld [vmem:[%s404 + $0x60] sm:$0xff]
      %v450 = vld [vmem:[%s404 + $0x68] sm:$0xff]
      %v451 = vld [vmem:[%s404 + $0x70] sm:$0xff]
      %v452 = vld [vmem:[%s404 + $0x78] sm:$0xff]
      %v453 = vld [vmem:[%s1] sm:$0xf]
      %v454 = vld [vmem:[%s1 + $0x4] sm:$0xf]
      %v455 = vld [vmem:[%s1 + $0x8] sm:$0xf]
      %v456 = vld [vmem:[%s1 + $0xc] sm:$0xf]
      %v457 = vld [vmem:[%s1 + $0x10] sm:$0xf]
      %v458 = vld [vmem:[%s1 + $0x14] sm:$0xf]
      %v459 = vld [vmem:[%s1 + $0x18] sm:$0xf]
      %v460 = vld [vmem:[%s1 + $0x1c] sm:$0xf]
      %v461 = vld [vmem:[%s1 + $0x20] sm:$0xf]
      %v462 = vld [vmem:[%s1 + $0x24] sm:$0xf]
      %v463 = vld [vmem:[%s1 + $0x28] sm:$0xf]
      %v464 = vld [vmem:[%s1 + $0x2c] sm:$0xf]
      %v465 = vld [vmem:[%s1 + $0x30] sm:$0xf]
      %v466 = vld [vmem:[%s1 + $0x34] sm:$0xf]
      %v467 = vld [vmem:[%s1 + $0x38] sm:$0xf]
      %v468 = vld [vmem:[%s1 + $0x3c] sm:$0xf]
      %v469 = vld [vmem:[%s1 + $0x40] sm:$0xf]
      %v470 = vld [vmem:[%s1 + $0x44] sm:$0xf]
      %v471 = vld [vmem:[%s2] sm:$0x1]
      %v473 = vperm.slane %v471, 0
      %v491 = vunpack.c.l.b16 %v437
      %v492 = vunpack.c.h.b16 %v437
      %v493 = vunpack.c.l.b16 %v438
      %v494 = vunpack.c.h.b16 %v438
      %v495 = vunpack.c.l.b16 %v439
      %v496 = vunpack.c.h.b16 %v439
      %v497 = vunpack.c.l.b16 %v440
      %v498 = vunpack.c.h.b16 %v440
      %v499 = vunpack.c.l.b16 %v441
      %v500 = vunpack.c.h.b16 %v441
      %v501 = vunpack.c.l.b16 %v442
      %v502 = vunpack.c.h.b16 %v442
      %v503 = vunpack.c.l.b16 %v443
      %v504 = vunpack.c.h.b16 %v443
      %v505 = vunpack.c.l.b16 %v444
      %v506 = vunpack.c.h.b16 %v444
      %v507 = vunpack.c.l.b16 %v445
      %v508 = vunpack.c.h.b16 %v445
      %v509 = vunpack.c.l.b16 %v446
      %v510 = vunpack.c.h.b16 %v446
      %v511 = vunpack.c.l.b16 %v447
      %v512 = vunpack.c.h.b16 %v447
      %v513 = vunpack.c.l.b16 %v448
      %v514 = vunpack.c.h.b16 %v448
      %v515 = vunpack.c.l.b16 %v449
      %v516 = vunpack.c.h.b16 %v449
      %v517 = vunpack.c.l.b16 %v450
      %v518 = vunpack.c.h.b16 %v450
      %v519 = vunpack.c.l.b16 %v451
      %v520 = vunpack.c.h.b16 %v451
      %v521 = vunpack.c.l.b16 %v452
      %v522 = vunpack.c.h.b16 %v452
      %v523 = vpack.c.b16 %v493, %v491
      %v524 = vpack.c.b16 %v494, %v492
      %v525 = vpack.c.b16 %v497, %v495
      %v526 = vpack.c.b16 %v498, %v496
      %v527 = vpack.c.b16 %v501, %v499
      %v528 = vpack.c.b16 %v502, %v500
      %v529 = vpack.c.b16 %v505, %v503
      %v530 = vpack.c.b16 %v506, %v504
      %v531 = vpack.c.b16 %v509, %v507
      %v532 = vpack.c.b16 %v510, %v508
      %v533 = vpack.c.b16 %v513, %v511
      %v534 = vpack.c.b16 %v514, %v512
      %v535 = vpack.c.b16 %v517, %v515
      %v536 = vpack.c.b16 %v518, %v516
      %v537 = vpack.c.b16 %v521, %v519
      %v538 = vpack.c.b16 %v522, %v520
      %v565 = vunpack.c.l.b16 %v453
      %v566 = vunpack.c.l.b16 %v454
      %v567 = vunpack.c.l.b16 %v455
      %v568 = vunpack.c.l.b16 %v456
      %v569 = vunpack.c.l.b16 %v457
      %v570 = vunpack.c.l.b16 %v458
      %v571 = vunpack.c.l.b16 %v459
      %v572 = vunpack.c.l.b16 %v460
      %v573 = vunpack.c.l.b16 %v461
      %v574 = vunpack.c.l.b16 %v462
      %v575 = vunpack.c.l.b16 %v463
      %v576 = vunpack.c.l.b16 %v464
      %v577 = vunpack.c.l.b16 %v465
      %v578 = vunpack.c.l.b16 %v466
      %v579 = vunpack.c.l.b16 %v467
      %v580 = vunpack.c.l.b16 %v468
      %v581 = vunpack.c.l.b16 %v469
      %v582 = vunpack.c.l.b16 %v470
      %v583 = vpack.c.b16 %v566, %v565
      %v584 = vpack.c.b16 %v568, %v567
      %v585 = vpack.c.b16 %v570, %v569
      %v586 = vpack.c.b16 %v572, %v571
      %v587 = vpack.c.b16 %v574, %v573
      %v588 = vpack.c.b16 %v576, %v575
      %v589 = vpack.c.b16 %v578, %v577
      %v590 = vpack.c.b16 %v580, %v579
      %v591 = vpack.c.b16 %v582, %v581
      %vm601 = vcmask 130048
      %v603 = vsel %vm601, %v524, 0
      %v606 = vsel %vm601, %v526, 0
      %v609 = vsel %vm601, %v528, 0
      %v612 = vsel %vm601, %v530, 0
      %v615 = vsel %vm601, %v532, 0
      %v618 = vsel %vm601, %v534, 0
      %v621 = vsel %vm601, %v536, 0
      %v624 = vsel %vm601, %v538, 0
      %626 = vmatpush.bf16.msra.mxu0 %v590
      %627 = vmatpush.bf16.msra.mxu0 %v589
      %628 = vmatpush.bf16.msra.mxu0 %v588
      %629 = vmatpush.bf16.msra.mxu0 %v587
      %630 = vmatpush.bf16.msra.mxu0 %v586
      %631 = vmatpush.bf16.msra.mxu0 %v585
      %632 = vmatpush.bf16.msra.mxu0 %v584
      %633 = vmatpush.bf16.msra.mxu0 %v583
      %634 = vmatmul.bf16.gmra.mxu0 %v523
      %v635 = vpop.f32.mrf.mxu0
      %v636 = vadd.f32 %v473, %v635
      %v637 = vpop.f32.mrf.mxu0
      %v638 = vadd.f32 %v473, %v637
      %639 = vmatmul.bf16.gmra.mxu0 %v525
      %v640 = vpop.f32.mrf.mxu0
      %v641 = vadd.f32 %v473, %v640
      %v642 = vpop.f32.mrf.mxu0
      %v643 = vadd.f32 %v473, %v642
      %644 = vmatmul.bf16.gmra.mxu0 %v527
      %v645 = vpop.f32.mrf.mxu0
      %v646 = vadd.f32 %v473, %v645
      %v647 = vpop.f32.mrf.mxu0
      %v648 = vadd.f32 %v473, %v647
      %649 = vmatmul.bf16.gmra.mxu0 %v529
      %v650 = vpop.f32.mrf.mxu0
      %v651 = vadd.f32 %v473, %v650
      %v652 = vpop.f32.mrf.mxu0
      %v653 = vadd.f32 %v473, %v652
      %654 = vmatmul.bf16.gmra.mxu0 %v531
      %v655 = vpop.f32.mrf.mxu0
      %v656 = vadd.f32 %v473, %v655
      %v657 = vpop.f32.mrf.mxu0
      %v658 = vadd.f32 %v473, %v657
      %659 = vmatmul.bf16.gmra.mxu0 %v533
      %v660 = vpop.f32.mrf.mxu0
      %v661 = vadd.f32 %v473, %v660
      %v662 = vpop.f32.mrf.mxu0
      %v663 = vadd.f32 %v473, %v662
      %664 = vmatmul.bf16.gmra.mxu0 %v535
      %v665 = vpop.f32.mrf.mxu0
      %v666 = vadd.f32 %v473, %v665
      %v667 = vpop.f32.mrf.mxu0
      %v668 = vadd.f32 %v473, %v667
      %669 = vmatmul.bf16.gmra.mxu0 %v537
      %v670 = vpop.f32.mrf.mxu0
      %v671 = vadd.f32 %v473, %v670
      %v672 = vpop.f32.mrf.mxu0
      %v673 = vadd.f32 %v473, %v672
      %674 = vdwg.mxu0
      %675 = vmatpush.bf16.msra.mxu0 0
      %676 = vmatpush.bf16.msra.mxu0 0
      %677 = vmatpush.bf16.msra.mxu0 0
      %678 = vmatpush.bf16.msra.mxu0 0
      %679 = vmatpush.bf16.msra.mxu0 0
      %680 = vmatpush.bf16.msra.mxu0 0
      %681 = vmatpush.bf16.msra.mxu0 0
      %682 = vmatpush.bf16.msra.mxu0 %v591
      %683 = vmatmul.bf16.gmra.mxu0 %v603
      %v684 = vpop.f32.mrf.mxu0
      %v685 = vadd.f32 %v636, %v684
      %v686 = vpop.f32.mrf.mxu0
      %v687 = vadd.f32 %v638, %v686
      %688 = vmatmul.bf16.gmra.mxu0 %v606
      %v689 = vpop.f32.mrf.mxu0
      %v690 = vadd.f32 %v641, %v689
      %v691 = vpop.f32.mrf.mxu0
      %v692 = vadd.f32 %v643, %v691
      %693 = vmatmul.bf16.gmra.mxu0 %v609
      %v694 = vpop.f32.mrf.mxu0
      %v695 = vadd.f32 %v646, %v694
      %v696 = vpop.f32.mrf.mxu0
      %v697 = vadd.f32 %v648, %v696
      %698 = vmatmul.bf16.gmra.mxu0 %v612
      %v699 = vpop.f32.mrf.mxu0
      %v700 = vadd.f32 %v651, %v699
      %v701 = vpop.f32.mrf.mxu0
      %v702 = vadd.f32 %v653, %v701
      %703 = vmatmul.bf16.gmra.mxu0 %v615
      %v704 = vpop.f32.mrf.mxu0
      %v705 = vadd.f32 %v656, %v704
      %v706 = vpop.f32.mrf.mxu0
      %v707 = vadd.f32 %v658, %v706
      %708 = vmatmul.bf16.gmra.mxu0 %v618
      %v709 = vpop.f32.mrf.mxu0
      %v710 = vadd.f32 %v661, %v709
      %v711 = vpop.f32.mrf.mxu0
      %v712 = vadd.f32 %v663, %v711
      %713 = vmatmul.bf16.gmra.mxu0 %v621
      %v714 = vpop.f32.mrf.mxu0
      %v715 = vadd.f32 %v666, %v714
      %v716 = vpop.f32.mrf.mxu0
      %v717 = vadd.f32 %v668, %v716
      %718 = vmatmul.bf16.gmra.mxu0 %v624
      %v719 = vpop.f32.mrf.mxu0
      %v720 = vadd.f32 %v671, %v719
      %v721 = vpop.f32.mrf.mxu0
      %v722 = vadd.f32 %v673, %v721
      %723 = vdwg.mxu0
      %v724 = vmax.f32 %v685, 0.0
      %v725 = vmax.f32 %v687, 0.0
      %v726 = vmax.f32 %v690, 0.0
      %v727 = vmax.f32 %v692, 0.0
      %v728 = vmax.f32 %v695, 0.0
      %v729 = vmax.f32 %v697, 0.0
      %v730 = vmax.f32 %v700, 0.0
      %v731 = vmax.f32 %v702, 0.0
      %v732 = vmax.f32 %v705, 0.0
      %v733 = vmax.f32 %v707, 0.0
      %v734 = vmax.f32 %v710, 0.0
      %v735 = vmax.f32 %v712, 0.0
      %v736 = vmax.f32 %v715, 0.0
      %v737 = vmax.f32 %v717, 0.0
      %v738 = vmax.f32 %v720, 0.0
      %v739 = vmax.f32 %v722, 0.0
      %vm740 = vcmask 523264
      %741 = vst.msk [vmem:[#allocation2] sm:$0xff] %vm740, %v724
      %742 = vst.msk [vmem:[#allocation2 + $0x8] sm:$0xff] %vm740, %v725
      %743 = vst.msk [vmem:[#allocation2 + $0x10] sm:$0xff] %vm740, %v726
      %744 = vst.msk [vmem:[#allocation2 + $0x18] sm:$0xff] %vm740, %v727
      %745 = vst.msk [vmem:[#allocation2 + $0x20] sm:$0xff] %vm740, %v728
      %746 = vst.msk [vmem:[#allocation2 + $0x28] sm:$0xff] %vm740, %v729
      %747 = vst.msk [vmem:[#allocation2 + $0x30] sm:$0xff] %vm740, %v730
      %748 = vst.msk [vmem:[#allocation2 + $0x38] sm:$0xff] %vm740, %v731
      %749 = vst.msk [vmem:[#allocation2 + $0x40] sm:$0xff] %vm740, %v732
      %750 = vst.msk [vmem:[#allocation2 + $0x48] sm:$0xff] %vm740, %v733
      %751 = vst.msk [vmem:[#allocation2 + $0x50] sm:$0xff] %vm740, %v734
      %752 = vst.msk [vmem:[#allocation2 + $0x58] sm:$0xff] %vm740, %v735
      %753 = vst.msk [vmem:[#allocation2 + $0x60] sm:$0xff] %vm740, %v736
      %754 = vst.msk [vmem:[#allocation2 + $0x68] sm:$0xff] %vm740, %v737
      %755 = vst.msk [vmem:[#allocation2 + $0x70] sm:$0xff] %vm740, %v738
      %756 = vst.msk [vmem:[#allocation2 + $0x78] sm:$0xff] %vm740, %v739
      %v757 = vld [vmem:[#allocation2] sm:$0xff]
      %v758 = vld [vmem:[#allocation2 + $0x8] sm:$0xff]
      %v759 = vld [vmem:[#allocation2 + $0x10] sm:$0xff]
      %v760 = vld [vmem:[#allocation2 + $0x18] sm:$0xff]
      %v761 = vld [vmem:[#allocation2 + $0x20] sm:$0xff]
      %v762 = vld [vmem:[#allocation2 + $0x28] sm:$0xff]
      %v763 = vld [vmem:[#allocation2 + $0x30] sm:$0xff]
      %v764 = vld [vmem:[#allocation2 + $0x38] sm:$0xff]
      %v765 = vld [vmem:[#allocation2 + $0x40] sm:$0xff]
      %v766 = vld [vmem:[#allocation2 + $0x48] sm:$0xff]
      %v767 = vld [vmem:[#allocation2 + $0x50] sm:$0xff]
      %v768 = vld [vmem:[#allocation2 + $0x58] sm:$0xff]
      %v769 = vld [vmem:[#allocation2 + $0x60] sm:$0xff]
      %v770 = vld [vmem:[#allocation2 + $0x68] sm:$0xff]
      %v771 = vld [vmem:[#allocation2 + $0x70] sm:$0xff]
      %v772 = vld [vmem:[#allocation2 + $0x78] sm:$0xff]
      %v773 = vld [vmem:[%s410] sm:$0xff]
      %v774 = vld [vmem:[%s410 + $0x8] sm:$0xff]
      %v775 = vld [vmem:[%s410 + $0x10] sm:$0xff]
      %v776 = vld [vmem:[%s410 + $0x18] sm:$0xff]
      %v777 = vld [vmem:[%s410 + $0x20] sm:$0xff]
      %v778 = vld [vmem:[%s410 + $0x28] sm:$0xff]
      %v779 = vld [vmem:[%s410 + $0x30] sm:$0xff]
      %v780 = vld [vmem:[%s410 + $0x38] sm:$0xff]
      %v781 = vld [vmem:[%s410 + $0x40] sm:$0xff]
      %v782 = vld [vmem:[%s410 + $0x48] sm:$0xff]
      %v783 = vld [vmem:[%s410 + $0x50] sm:$0xff]
      %v784 = vld [vmem:[%s410 + $0x58] sm:$0xff]
      %v785 = vld [vmem:[%s410 + $0x60] sm:$0xff]
      %v786 = vld [vmem:[%s410 + $0x68] sm:$0xff]
      %v787 = vld [vmem:[%s410 + $0x70] sm:$0xff]
      %v788 = vld [vmem:[%s410 + $0x78] sm:$0xff]
      %790 = vset.pattern.permute.xlu0 0
      %791 = vperm.xlu0 %790, %v773
      %v792 = vpop.permute.xlu0 %791
      %795 = vset.pattern.permute.xlu0 0
      %796 = vperm.xlu0 %795, %v774
      %v797 = vpop.permute.xlu0 %796
      %800 = vset.pattern.permute.xlu0 0
      %801 = vperm.xlu0 %800, %v775
      %v802 = vpop.permute.xlu0 %801
      %805 = vset.pattern.permute.xlu0 0
      %806 = vperm.xlu0 %805, %v776
      %v807 = vpop.permute.xlu0 %806
      %810 = vset.pattern.permute.xlu0 0
      %811 = vperm.xlu0 %810, %v777
      %v812 = vpop.permute.xlu0 %811
      %815 = vset.pattern.permute.xlu0 0
      %816 = vperm.xlu0 %815, %v778
      %v817 = vpop.permute.xlu0 %816
      %820 = vset.pattern.permute.xlu0 0
      %821 = vperm.xlu0 %820, %v779
      %v822 = vpop.permute.xlu0 %821
      %825 = vset.pattern.permute.xlu0 0
      %826 = vperm.xlu0 %825, %v780
      %v827 = vpop.permute.xlu0 %826
      %830 = vset.pattern.permute.xlu0 0
      %831 = vperm.xlu0 %830, %v781
      %v832 = vpop.permute.xlu0 %831
      %835 = vset.pattern.permute.xlu0 0
      %836 = vperm.xlu0 %835, %v782
      %v837 = vpop.permute.xlu0 %836
      %840 = vset.pattern.permute.xlu0 0
      %841 = vperm.xlu0 %840, %v783
      %v842 = vpop.permute.xlu0 %841
      %845 = vset.pattern.permute.xlu0 0
      %846 = vperm.xlu0 %845, %v784
      %v847 = vpop.permute.xlu0 %846
      %850 = vset.pattern.permute.xlu0 0
      %851 = vperm.xlu0 %850, %v785
      %v852 = vpop.permute.xlu0 %851
      %855 = vset.pattern.permute.xlu0 0
      %856 = vperm.xlu0 %855, %v786
      %v857 = vpop.permute.xlu0 %856
      %860 = vset.pattern.permute.xlu0 0
      %861 = vperm.xlu0 %860, %v787
      %v862 = vpop.permute.xlu0 %861
      %865 = vset.pattern.permute.xlu0 0
      %866 = vperm.xlu0 %865, %v788
      %v867 = vpop.permute.xlu0 %866
      %v869 = vmul.f32 %v757, %v792
      %v870 = vmul.f32 %v758, %v797
      %v871 = vmul.f32 %v759, %v802
      %v872 = vmul.f32 %v760, %v807
      %v873 = vmul.f32 %v761, %v812
      %v874 = vmul.f32 %v762, %v817
      %v875 = vmul.f32 %v763, %v822
      %v876 = vmul.f32 %v764, %v827
      %v877 = vmul.f32 %v765, %v832
      %v878 = vmul.f32 %v766, %v837
      %v879 = vmul.f32 %v767, %v842
      %v880 = vmul.f32 %v768, %v847
      %v881 = vmul.f32 %v769, %v852
      %v882 = vmul.f32 %v770, %v857
      %v883 = vmul.f32 %v771, %v862
      %v884 = vmul.f32 %v772, %v867
      %v885 = vsel %vm740, %v869, -inf
      %v886 = vsel %vm740, %v870, -inf
      %v887 = vmax.f32 %v885, %v886
      %v888 = vrot.slane %v887, 4
      %v889 = vmax.f32 %v887, %v888
      %v890 = vrot.slane %v889, 2
      %v891 = vmax.f32 %v889, %v890
      %v892 = vrot.slane %v891, 1
      %v893 = vmax.f32 %v891, %v892
      %v894 = vsel %vm740, %v871, -inf
      %v895 = vsel %vm740, %v872, -inf
      %v896 = vmax.f32 %v894, %v895
      %v897 = vrot.slane %v896, 4
      %v898 = vmax.f32 %v896, %v897
      %v899 = vrot.slane %v898, 2
      %v900 = vmax.f32 %v898, %v899
      %v901 = vrot.slane %v900, 1
      %v902 = vmax.f32 %v900, %v901
      %v903 = vsel %vm740, %v873, -inf
      %v904 = vsel %vm740, %v874, -inf
      %v905 = vmax.f32 %v903, %v904
      %v906 = vrot.slane %v905, 4
      %v907 = vmax.f32 %v905, %v906
      %v908 = vrot.slane %v907, 2
      %v909 = vmax.f32 %v907, %v908
      %v910 = vrot.slane %v909, 1
      %v911 = vmax.f32 %v909, %v910
      %v912 = vsel %vm740, %v875, -inf
      %v913 = vsel %vm740, %v876, -inf
      %v914 = vmax.f32 %v912, %v913
      %v915 = vrot.slane %v914, 4
      %v916 = vmax.f32 %v914, %v915
      %v917 = vrot.slane %v916, 2
      %v918 = vmax.f32 %v916, %v917
      %v919 = vrot.slane %v918, 1
      %v920 = vmax.f32 %v918, %v919
      %v921 = vsel %vm740, %v877, -inf
      %v922 = vsel %vm740, %v878, -inf
      %v923 = vmax.f32 %v921, %v922
      %v924 = vrot.slane %v923, 4
      %v925 = vmax.f32 %v923, %v924
      %v926 = vrot.slane %v925, 2
      %v927 = vmax.f32 %v925, %v926
      %v928 = vrot.slane %v927, 1
      %v929 = vmax.f32 %v927, %v928
      %v930 = vsel %vm740, %v879, -inf
      %v931 = vsel %vm740, %v880, -inf
      %v932 = vmax.f32 %v930, %v931
      %v933 = vrot.slane %v932, 4
      %v934 = vmax.f32 %v932, %v933
      %v935 = vrot.slane %v934, 2
      %v936 = vmax.f32 %v934, %v935
      %v937 = vrot.slane %v936, 1
      %v938 = vmax.f32 %v936, %v937
      %v939 = vsel %vm740, %v881, -inf
      %v940 = vsel %vm740, %v882, -inf
      %v941 = vmax.f32 %v939, %v940
      %v942 = vrot.slane %v941, 4
      %v943 = vmax.f32 %v941, %v942
      %v944 = vrot.slane %v943, 2
      %v945 = vmax.f32 %v943, %v944
      %v946 = vrot.slane %v945, 1
      %v947 = vmax.f32 %v945, %v946
      %v948 = vsel %vm740, %v883, -inf
      %v949 = vsel %vm740, %v884, -inf
      %v950 = vmax.f32 %v948, %v949
      %v951 = vrot.slane %v950, 4
      %v952 = vmax.f32 %v950, %v951
      %v953 = vrot.slane %v952, 2
      %v954 = vmax.f32 %v952, %v953
      %v955 = vrot.slane %v954, 1
      %v956 = vmax.f32 %v954, %v955
      %v957 = vld [vmem:[%s416] sm:$0xff]
      %v958 = vld [vmem:[%s416 + $0x8] sm:$0xff]
      %v959 = vld [vmem:[%s416 + $0x10] sm:$0xff]
      %v960 = vld [vmem:[%s416 + $0x18] sm:$0xff]
      %v961 = vld [vmem:[%s416 + $0x20] sm:$0xff]
      %v962 = vld [vmem:[%s416 + $0x28] sm:$0xff]
      %v963 = vld [vmem:[%s416 + $0x30] sm:$0xff]
      %v964 = vld [vmem:[%s416 + $0x38] sm:$0xff]
      %v965 = vld [vmem:[%s416 + $0x40] sm:$0xff]
      %v966 = vld [vmem:[%s416 + $0x48] sm:$0xff]
      %v967 = vld [vmem:[%s416 + $0x50] sm:$0xff]
      %v968 = vld [vmem:[%s416 + $0x58] sm:$0xff]
      %v969 = vld [vmem:[%s416 + $0x60] sm:$0xff]
      %v970 = vld [vmem:[%s416 + $0x68] sm:$0xff]
      %v971 = vld [vmem:[%s416 + $0x70] sm:$0xff]
      %v972 = vld [vmem:[%s416 + $0x78] sm:$0xff]
      %974 = vset.pattern.permute.xlu0 0
      %975 = vperm.xlu0 %974, %v957
      %v976 = vpop.permute.xlu0 %975
      %979 = vset.pattern.permute.xlu0 0
      %980 = vperm.xlu0 %979, %v958
      %v981 = vpop.permute.xlu0 %980
      %984 = vset.pattern.permute.xlu0 0
      %985 = vperm.xlu0 %984, %v959
      %v986 = vpop.permute.xlu0 %985
      %989 = vset.pattern.permute.xlu0 0
      %990 = vperm.xlu0 %989, %v960
      %v991 = vpop.permute.xlu0 %990
      %994 = vset.pattern.permute.xlu0 0
      %995 = vperm.xlu0 %994, %v961
      %v996 = vpop.permute.xlu0 %995
      %999 = vset.pattern.permute.xlu0 0
      %1000 = vperm.xlu0 %999, %v962
      %v1001 = vpop.permute.xlu0 %1000
      %1004 = vset.pattern.permute.xlu0 0
      %1005 = vperm.xlu0 %1004, %v963
      %v1006 = vpop.permute.xlu0 %1005
      %1009 = vset.pattern.permute.xlu0 0
      %1010 = vperm.xlu0 %1009, %v964
      %v1011 = vpop.permute.xlu0 %1010
      %1014 = vset.pattern.permute.xlu0 0
      %1015 = vperm.xlu0 %1014, %v965
      %v1016 = vpop.permute.xlu0 %1015
      %1019 = vset.pattern.permute.xlu0 0
      %1020 = vperm.xlu0 %1019, %v966
      %v1021 = vpop.permute.xlu0 %1020
      %1024 = vset.pattern.permute.xlu0 0
      %1025 = vperm.xlu0 %1024, %v967
      %v1026 = vpop.permute.xlu0 %1025
      %1029 = vset.pattern.permute.xlu0 0
      %1030 = vperm.xlu0 %1029, %v968
      %v1031 = vpop.permute.xlu0 %1030
      %1034 = vset.pattern.permute.xlu0 0
      %1035 = vperm.xlu0 %1034, %v969
      %v1036 = vpop.permute.xlu0 %1035
      %1039 = vset.pattern.permute.xlu0 0
      %1040 = vperm.xlu0 %1039, %v970
      %v1041 = vpop.permute.xlu0 %1040
      %1044 = vset.pattern.permute.xlu0 0
      %1045 = vperm.xlu0 %1044, %v971
      %v1046 = vpop.permute.xlu0 %1045
      %1049 = vset.pattern.permute.xlu0 0
      %1050 = vperm.xlu0 %1049, %v972
      %v1051 = vpop.permute.xlu0 %1050
      %v1053 = vmul.f32 %v757, %v976
      %v1054 = vmul.f32 %v758, %v981
      %v1055 = vmul.f32 %v759, %v986
      %v1056 = vmul.f32 %v760, %v991
      %v1057 = vmul.f32 %v761, %v996
      %v1058 = vmul.f32 %v762, %v1001
      %v1059 = vmul.f32 %v763, %v1006
      %v1060 = vmul.f32 %v764, %v1011
      %v1061 = vmul.f32 %v765, %v1016
      %v1062 = vmul.f32 %v766, %v1021
      %v1063 = vmul.f32 %v767, %v1026
      %v1064 = vmul.f32 %v768, %v1031
      %v1065 = vmul.f32 %v769, %v1036
      %v1066 = vmul.f32 %v770, %v1041
      %v1067 = vmul.f32 %v771, %v1046
      %v1068 = vmul.f32 %v772, %v1051
      %v1069 = vsel %vm740, %v1053, -inf
      %v1070 = vsel %vm740, %v1054, -inf
      %v1071 = vmax.f32 %v1069, %v1070
      %v1072 = vrot.slane %v1071, 4
      %v1073 = vmax.f32 %v1071, %v1072
      %v1074 = vrot.slane %v1073, 2
      %v1075 = vmax.f32 %v1073, %v1074
      %v1076 = vrot.slane %v1075, 1
      %v1077 = vmax.f32 %v1075, %v1076
      %v1078 = vsel %vm740, %v1055, -inf
      %v1079 = vsel %vm740, %v1056, -inf
      %v1080 = vmax.f32 %v1078, %v1079
      %v1081 = vrot.slane %v1080, 4
      %v1082 = vmax.f32 %v1080, %v1081
      %v1083 = vrot.slane %v1082, 2
      %v1084 = vmax.f32 %v1082, %v1083
      %v1085 = vrot.slane %v1084, 1
      %v1086 = vmax.f32 %v1084, %v1085
      %v1087 = vsel %vm740, %v1057, -inf
      %v1088 = vsel %vm740, %v1058, -inf
      %v1089 = vmax.f32 %v1087, %v1088
      %v1090 = vrot.slane %v1089, 4
      %v1091 = vmax.f32 %v1089, %v1090
      %v1092 = vrot.slane %v1091, 2
      %v1093 = vmax.f32 %v1091, %v1092
      %v1094 = vrot.slane %v1093, 1
      %v1095 = vmax.f32 %v1093, %v1094
      %v1096 = vsel %vm740, %v1059, -inf
      %v1097 = vsel %vm740, %v1060, -inf
      %v1098 = vmax.f32 %v1096, %v1097
      %v1099 = vrot.slane %v1098, 4
      %v1100 = vmax.f32 %v1098, %v1099
      %v1101 = vrot.slane %v1100, 2
      %v1102 = vmax.f32 %v1100, %v1101
      %v1103 = vrot.slane %v1102, 1
      %v1104 = vmax.f32 %v1102, %v1103
      %v1105 = vsel %vm740, %v1061, -inf
      %v1106 = vsel %vm740, %v1062, -inf
      %v1107 = vmax.f32 %v1105, %v1106
      %v1108 = vrot.slane %v1107, 4
      %v1109 = vmax.f32 %v1107, %v1108
      %v1110 = vrot.slane %v1109, 2
      %v1111 = vmax.f32 %v1109, %v1110
      %v1112 = vrot.slane %v1111, 1
      %v1113 = vmax.f32 %v1111, %v1112
      %v1114 = vsel %vm740, %v1063, -inf
      %v1115 = vsel %vm740, %v1064, -inf
      %v1116 = vmax.f32 %v1114, %v1115
      %v1117 = vrot.slane %v1116, 4
      %v1118 = vmax.f32 %v1116, %v1117
      %v1119 = vrot.slane %v1118, 2
      %v1120 = vmax.f32 %v1118, %v1119
      %v1121 = vrot.slane %v1120, 1
      %v1122 = vmax.f32 %v1120, %v1121
      %v1123 = vsel %vm740, %v1065, -inf
      %v1124 = vsel %vm740, %v1066, -inf
      %v1125 = vmax.f32 %v1123, %v1124
      %v1126 = vrot.slane %v1125, 4
      %v1127 = vmax.f32 %v1125, %v1126
      %v1128 = vrot.slane %v1127, 2
      %v1129 = vmax.f32 %v1127, %v1128
      %v1130 = vrot.slane %v1129, 1
      %v1131 = vmax.f32 %v1129, %v1130
      %v1132 = vsel %vm740, %v1067, -inf
      %v1133 = vsel %vm740, %v1068, -inf
      %v1134 = vmax.f32 %v1132, %v1133
      %v1135 = vrot.slane %v1134, 4
      %v1136 = vmax.f32 %v1134, %v1135
      %v1137 = vrot.slane %v1136, 2
      %v1138 = vmax.f32 %v1136, %v1137
      %v1139 = vrot.slane %v1138, 1
      %v1140 = vmax.f32 %v1138, %v1139
      %v1141 = vld [vmem:[%s422] sm:$0xff]
      %v1142 = vld [vmem:[%s422 + $0x8] sm:$0xff]
      %v1143 = vld [vmem:[%s422 + $0x10] sm:$0xff]
      %v1144 = vld [vmem:[%s422 + $0x18] sm:$0xff]
      %v1145 = vld [vmem:[%s422 + $0x20] sm:$0xff]
      %v1146 = vld [vmem:[%s422 + $0x28] sm:$0xff]
      %v1147 = vld [vmem:[%s422 + $0x30] sm:$0xff]
      %v1148 = vld [vmem:[%s422 + $0x38] sm:$0xff]
      %v1149 = vld [vmem:[%s422 + $0x40] sm:$0xff]
      %v1150 = vld [vmem:[%s422 + $0x48] sm:$0xff]
      %v1151 = vld [vmem:[%s422 + $0x50] sm:$0xff]
      %v1152 = vld [vmem:[%s422 + $0x58] sm:$0xff]
      %v1153 = vld [vmem:[%s422 + $0x60] sm:$0xff]
      %v1154 = vld [vmem:[%s422 + $0x68] sm:$0xff]
      %v1155 = vld [vmem:[%s422 + $0x70] sm:$0xff]
      %v1156 = vld [vmem:[%s422 + $0x78] sm:$0xff]
      %1158 = vset.pattern.permute.xlu0 0
      %1159 = vperm.xlu0 %1158, %v1141
      %v1160 = vpop.permute.xlu0 %1159
      %1163 = vset.pattern.permute.xlu0 0
      %1164 = vperm.xlu0 %1163, %v1142
      %v1165 = vpop.permute.xlu0 %1164
      %1168 = vset.pattern.permute.xlu0 0
      %1169 = vperm.xlu0 %1168, %v1143
      %v1170 = vpop.permute.xlu0 %1169
      %1173 = vset.pattern.permute.xlu0 0
      %1174 = vperm.xlu0 %1173, %v1144
      %v1175 = vpop.permute.xlu0 %1174
      %1178 = vset.pattern.permute.xlu0 0
      %1179 = vperm.xlu0 %1178, %v1145
      %v1180 = vpop.permute.xlu0 %1179
      %1183 = vset.pattern.permute.xlu0 0
      %1184 = vperm.xlu0 %1183, %v1146
      %v1185 = vpop.permute.xlu0 %1184
      %1188 = vset.pattern.permute.xlu0 0
      %1189 = vperm.xlu0 %1188, %v1147
      %v1190 = vpop.permute.xlu0 %1189
      %1193 = vset.pattern.permute.xlu0 0
      %1194 = vperm.xlu0 %1193, %v1148
      %v1195 = vpop.permute.xlu0 %1194
      %1198 = vset.pattern.permute.xlu0 0
      %1199 = vperm.xlu0 %1198, %v1149
      %v1200 = vpop.permute.xlu0 %1199
      %1203 = vset.pattern.permute.xlu0 0
      %1204 = vperm.xlu0 %1203, %v1150
      %v1205 = vpop.permute.xlu0 %1204
      %1208 = vset.pattern.permute.xlu0 0
      %1209 = vperm.xlu0 %1208, %v1151
      %v1210 = vpop.permute.xlu0 %1209
      %1213 = vset.pattern.permute.xlu0 0
      %1214 = vperm.xlu0 %1213, %v1152
      %v1215 = vpop.permute.xlu0 %1214
      %1218 = vset.pattern.permute.xlu0 0
      %1219 = vperm.xlu0 %1218, %v1153
      %v1220 = vpop.permute.xlu0 %1219
      %1223 = vset.pattern.permute.xlu0 0
      %1224 = vperm.xlu0 %1223, %v1154
      %v1225 = vpop.permute.xlu0 %1224
      %1228 = vset.pattern.permute.xlu0 0
      %1229 = vperm.xlu0 %1228, %v1155
      %v1230 = vpop.permute.xlu0 %1229
      %1233 = vset.pattern.permute.xlu0 0
      %1234 = vperm.xlu0 %1233, %v1156
      %v1235 = vpop.permute.xlu0 %1234
      %v1237 = vmul.f32 %v757, %v1160
      %v1238 = vmul.f32 %v758, %v1165
      %v1239 = vmul.f32 %v759, %v1170
      %v1240 = vmul.f32 %v760, %v1175
      %v1241 = vmul.f32 %v761, %v1180
      %v1242 = vmul.f32 %v762, %v1185
      %v1243 = vmul.f32 %v763, %v1190
      %v1244 = vmul.f32 %v764, %v1195
      %v1245 = vmul.f32 %v765, %v1200
      %v1246 = vmul.f32 %v766, %v1205
      %v1247 = vmul.f32 %v767, %v1210
      %v1248 = vmul.f32 %v768, %v1215
      %v1249 = vmul.f32 %v769, %v1220
      %v1250 = vmul.f32 %v770, %v1225
      %v1251 = vmul.f32 %v771, %v1230
      %v1252 = vmul.f32 %v772, %v1235
      %v1253 = vsel %vm740, %v1237, -inf
      %v1254 = vsel %vm740, %v1238, -inf
      %v1255 = vmax.f32 %v1253, %v1254
      %v1256 = vrot.slane %v1255, 4
      %v1257 = vmax.f32 %v1255, %v1256
      %v1258 = vrot.slane %v1257, 2
      %v1259 = vmax.f32 %v1257, %v1258
      %v1260 = vrot.slane %v1259, 1
      %v1261 = vmax.f32 %v1259, %v1260
      %v1262 = vsel %vm740, %v1239, -inf
      %v1263 = vsel %vm740, %v1240, -inf
      %v1264 = vmax.f32 %v1262, %v1263
      %v1265 = vrot.slane %v1264, 4
      %v1266 = vmax.f32 %v1264, %v1265
      %v1267 = vrot.slane %v1266, 2
      %v1268 = vmax.f32 %v1266, %v1267
      %v1269 = vrot.slane %v1268, 1
      %v1270 = vmax.f32 %v1268, %v1269
      %v1271 = vsel %vm740, %v1241, -inf
      %v1272 = vsel %vm740, %v1242, -inf
      %v1273 = vmax.f32 %v1271, %v1272
      %v1274 = vrot.slane %v1273, 4
      %v1275 = vmax.f32 %v1273, %v1274
      %v1276 = vrot.slane %v1275, 2
      %v1277 = vmax.f32 %v1275, %v1276
      %v1278 = vrot.slane %v1277, 1
      %v1279 = vmax.f32 %v1277, %v1278
      %v1280 = vsel %vm740, %v1243, -inf
      %v1281 = vsel %vm740, %v1244, -inf
      %v1282 = vmax.f32 %v1280, %v1281
      %v1283 = vrot.slane %v1282, 4
      %v1284 = vmax.f32 %v1282, %v1283
      %v1285 = vrot.slane %v1284, 2
      %v1286 = vmax.f32 %v1284, %v1285
      %v1287 = vrot.slane %v1286, 1
      %v1288 = vmax.f32 %v1286, %v1287
      %v1289 = vsel %vm740, %v1245, -inf
      %v1290 = vsel %vm740, %v1246, -inf
      %v1291 = vmax.f32 %v1289, %v1290
      %v1292 = vrot.slane %v1291, 4
      %v1293 = vmax.f32 %v1291, %v1292
      %v1294 = vrot.slane %v1293, 2
      %v1295 = vmax.f32 %v1293, %v1294
      %v1296 = vrot.slane %v1295, 1
      %v1297 = vmax.f32 %v1295, %v1296
      %v1298 = vsel %vm740, %v1247, -inf
      %v1299 = vsel %vm740, %v1248, -inf
      %v1300 = vmax.f32 %v1298, %v1299
      %v1301 = vrot.slane %v1300, 4
      %v1302 = vmax.f32 %v1300, %v1301
      %v1303 = vrot.slane %v1302, 2
      %v1304 = vmax.f32 %v1302, %v1303
      %v1305 = vrot.slane %v1304, 1
      %v1306 = vmax.f32 %v1304, %v1305
      %v1307 = vsel %vm740, %v1249, -inf
      %v1308 = vsel %vm740, %v1250, -inf
      %v1309 = vmax.f32 %v1307, %v1308
      %v1310 = vrot.slane %v1309, 4
      %v1311 = vmax.f32 %v1309, %v1310
      %v1312 = vrot.slane %v1311, 2
      %v1313 = vmax.f32 %v1311, %v1312
      %v1314 = vrot.slane %v1313, 1
      %v1315 = vmax.f32 %v1313, %v1314
      %v1316 = vsel %vm740, %v1251, -inf
      %v1317 = vsel %vm740, %v1252, -inf
      %v1318 = vmax.f32 %v1316, %v1317
      %v1319 = vrot.slane %v1318, 4
      %v1320 = vmax.f32 %v1318, %v1319
      %v1321 = vrot.slane %v1320, 2
      %v1322 = vmax.f32 %v1320, %v1321
      %v1323 = vrot.slane %v1322, 1
      %v1324 = vmax.f32 %v1322, %v1323
      %v1325 = vld [vmem:[%s427] sm:$0xff]
      %v1326 = vtanh.pop %v893
      %v1327 = vtanh.pop %v902
      %v1328 = vtanh.pop %v911
      %v1329 = vtanh.pop %v920
      %v1330 = vtanh.pop %v929
      %v1331 = vtanh.pop %v938
      %v1332 = vtanh.pop %v947
      %v1333 = vtanh.pop %v956
      %v1335 = vrot.slane %v1325, 1
      %v1336 = vrot.slane %v1325, 2
      %v1337 = vrot.slane %v1325, 3
      %v1338 = vrot.slane %v1325, 4
      %v1339 = vrot.slane %v1325, 5
      %v1340 = vrot.slane %v1325, 6
      %v1341 = vrot.slane %v1325, 7
      %v1350 = vmul.f32 %v1326, %v1325
      %v1351 = vmul.f32 %v1327, %v1335
      %v1352 = vmul.f32 %v1328, %v1336
      %v1353 = vmul.f32 %v1329, %v1337
      %v1354 = vmul.f32 %v1330, %v1338
      %v1355 = vmul.f32 %v1331, %v1339
      %v1356 = vmul.f32 %v1332, %v1340
      %v1357 = vmul.f32 %v1333, %v1341
      %v1366 = vrot.slane %v1351, 7
      %vm1367 = vcmask 1041409
      %v1368 = vsel %vm1367, %v1366, %v1350
      %v1369 = vrot.slane %v1352, 6
      %vm1370 = vcmask 1042434
      %v1371 = vsel %vm1370, %v1369, %v1368
      %v1372 = vrot.slane %v1353, 5
      %vm1373 = vcmask 1043459
      %v1374 = vsel %vm1373, %v1372, %v1371
      %v1375 = vrot.slane %v1354, 4
      %vm1376 = vcmask 1044484
      %v1377 = vsel %vm1376, %v1375, %v1374
      %v1378 = vrot.slane %v1355, 3
      %vm1379 = vcmask 1045509
      %v1380 = vsel %vm1379, %v1378, %v1377
      %v1381 = vrot.slane %v1356, 2
      %vm1382 = vcmask 1046534
      %v1383 = vsel %vm1382, %v1381, %v1380
      %v1384 = vrot.slane %v1357, 1
      %vm1385 = vcmask 1047559
      %v1386 = vsel %vm1385, %v1384, %v1383
      %v1388 = vsel %vm740, %v1386, 0.0
      %1389 = vadd.xlane.f32.xlu0 %v1388
      %v1390 = vpop.xlane.xlu0 %1389
      %v1391 = vtanh.pop %v1077
      %v1392 = vtanh.pop %v1086
      %v1393 = vtanh.pop %v1095
      %v1394 = vtanh.pop %v1104
      %v1395 = vtanh.pop %v1113
      %v1396 = vtanh.pop %v1122
      %v1397 = vtanh.pop %v1131
      %v1398 = vtanh.pop %v1140
      %v1399 = vmul.f32 %v1391, %v1325
      %v1400 = vmul.f32 %v1392, %v1335
      %v1401 = vmul.f32 %v1393, %v1336
      %v1402 = vmul.f32 %v1394, %v1337
      %v1403 = vmul.f32 %v1395, %v1338
      %v1404 = vmul.f32 %v1396, %v1339
      %v1405 = vmul.f32 %v1397, %v1340
      %v1406 = vmul.f32 %v1398, %v1341
      %v1415 = vrot.slane %v1400, 7
      %v1416 = vsel %vm1367, %v1415, %v1399
      %v1417 = vrot.slane %v1401, 6
      %v1418 = vsel %vm1370, %v1417, %v1416
      %v1419 = vrot.slane %v1402, 5
      %v1420 = vsel %vm1373, %v1419, %v1418
      %v1421 = vrot.slane %v1403, 4
      %v1422 = vsel %vm1376, %v1421, %v1420
      %v1423 = vrot.slane %v1404, 3
      %v1424 = vsel %vm1379, %v1423, %v1422
      %v1425 = vrot.slane %v1405, 2
      %v1426 = vsel %vm1382, %v1425, %v1424
      %v1427 = vrot.slane %v1406, 1
      %v1428 = vsel %vm1385, %v1427, %v1426
      %v1430 = vsel %vm740, %v1428, 0.0
      %1431 = vadd.xlane.f32.xlu0 %v1430
      %v1432 = vpop.xlane.xlu0 %1431
      %v1433 = vtanh.pop %v1261
      %v1434 = vtanh.pop %v1270
      %v1435 = vtanh.pop %v1279
      %v1436 = vtanh.pop %v1288
      %v1437 = vtanh.pop %v1297
      %v1438 = vtanh.pop %v1306
      %v1439 = vtanh.pop %v1315
      %v1440 = vtanh.pop %v1324
      %v1441 = vmul.f32 %v1433, %v1325
      %v1442 = vmul.f32 %v1434, %v1335
      %v1443 = vmul.f32 %v1435, %v1336
      %v1444 = vmul.f32 %v1436, %v1337
      %v1445 = vmul.f32 %v1437, %v1338
      %v1446 = vmul.f32 %v1438, %v1339
      %v1447 = vmul.f32 %v1439, %v1340
      %v1448 = vmul.f32 %v1440, %v1341
      %v1457 = vrot.slane %v1442, 7
      %v1458 = vsel %vm1367, %v1457, %v1441
      %v1459 = vrot.slane %v1443, 6
      %v1460 = vsel %vm1370, %v1459, %v1458
      %v1461 = vrot.slane %v1444, 5
      %v1462 = vsel %vm1373, %v1461, %v1460
      %v1463 = vrot.slane %v1445, 4
      %v1464 = vsel %vm1376, %v1463, %v1462
      %v1465 = vrot.slane %v1446, 3
      %v1466 = vsel %vm1379, %v1465, %v1464
      %v1467 = vrot.slane %v1447, 2
      %v1468 = vsel %vm1382, %v1467, %v1466
      %v1469 = vrot.slane %v1448, 1
      %v1470 = vsel %vm1385, %v1469, %v1468
      %v1472 = vsel %vm740, %v1470, 0.0
      %1473 = vadd.xlane.f32.xlu0 %v1472
      %v1474 = vpop.xlane.xlu0 %1473
      %v1475 = vmax.f32 %v1390, %v1432
      %v1476 = vmax.f32 %v1475, %v1474
      %v1477 = vsub.f32 %v1390, %v1476
      %v1478 = vmul.f32 %v1477, 1.442695
      %v1479 = vpow.pop %v1478
      %v1480 = vsub.f32 %v1432, %v1476
      %v1481 = vmul.f32 %v1480, 1.442695
      %v1482 = vpow.pop %v1481
      %v1483 = vsub.f32 %v1474, %v1476
      %v1484 = vmul.f32 %v1483, 1.442695
      %v1485 = vpow.pop %v1484
      %v1486 = vadd.f32 %v1479, %v1482
      %v1487 = vadd.f32 %v1486, %v1485
      %v1488 = vrcp.pop %v1487
      %v1490 = vrot.slane %v1479, 1
      %v1491 = vrot.slane %v1479, 2
      %v1492 = vrot.slane %v1479, 3
      %v1493 = vrot.slane %v1479, 4
      %v1494 = vrot.slane %v1479, 5
      %v1495 = vrot.slane %v1479, 6
      %v1496 = vrot.slane %v1479, 7
      %v1505 = vmul.f32 %v893, %v1479
      %v1506 = vmul.f32 %v902, %v1490
      %v1507 = vmul.f32 %v911, %v1491
      %v1508 = vmul.f32 %v920, %v1492
      %v1509 = vmul.f32 %v929, %v1493
      %v1510 = vmul.f32 %v938, %v1494
      %v1511 = vmul.f32 %v947, %v1495
      %v1512 = vmul.f32 %v956, %v1496
      %v1514 = vrot.slane %v1482, 1
      %v1515 = vrot.slane %v1482, 2
      %v1516 = vrot.slane %v1482, 3
      %v1517 = vrot.slane %v1482, 4
      %v1518 = vrot.slane %v1482, 5
      %v1519 = vrot.slane %v1482, 6
      %v1520 = vrot.slane %v1482, 7
      %v1529 = vmul.f32 %v1077, %v1482
      %v1530 = vmul.f32 %v1086, %v1514
      %v1531 = vmul.f32 %v1095, %v1515
      %v1532 = vmul.f32 %v1104, %v1516
      %v1533 = vmul.f32 %v1113, %v1517
      %v1534 = vmul.f32 %v1122, %v1518
      %v1535 = vmul.f32 %v1131, %v1519
      %v1536 = vmul.f32 %v1140, %v1520
      %v1537 = vadd.f32 %v1505, %v1529
      %v1538 = vadd.f32 %v1506, %v1530
      %v1539 = vadd.f32 %v1507, %v1531
      %v1540 = vadd.f32 %v1508, %v1532
      %v1541 = vadd.f32 %v1509, %v1533
      %v1542 = vadd.f32 %v1510, %v1534
      %v1543 = vadd.f32 %v1511, %v1535
      %v1544 = vadd.f32 %v1512, %v1536
      %v1546 = vrot.slane %v1485, 1
      %v1547 = vrot.slane %v1485, 2
      %v1548 = vrot.slane %v1485, 3
      %v1549 = vrot.slane %v1485, 4
      %v1550 = vrot.slane %v1485, 5
      %v1551 = vrot.slane %v1485, 6
      %v1552 = vrot.slane %v1485, 7
      %v1561 = vmul.f32 %v1261, %v1485
      %v1562 = vmul.f32 %v1270, %v1546
      %v1563 = vmul.f32 %v1279, %v1547
      %v1564 = vmul.f32 %v1288, %v1548
      %v1565 = vmul.f32 %v1297, %v1549
      %v1566 = vmul.f32 %v1306, %v1550
      %v1567 = vmul.f32 %v1315, %v1551
      %v1568 = vmul.f32 %v1324, %v1552
      %v1569 = vadd.f32 %v1537, %v1561
      %v1570 = vadd.f32 %v1538, %v1562
      %v1571 = vadd.f32 %v1539, %v1563
      %v1572 = vadd.f32 %v1540, %v1564
      %v1573 = vadd.f32 %v1541, %v1565
      %v1574 = vadd.f32 %v1542, %v1566
      %v1575 = vadd.f32 %v1543, %v1567
      %v1576 = vadd.f32 %v1544, %v1568
      %v1578 = vrot.slane %v1488, 1
      %v1579 = vrot.slane %v1488, 2
      %v1580 = vrot.slane %v1488, 3
      %v1581 = vrot.slane %v1488, 4
      %v1582 = vrot.slane %v1488, 5
      %v1583 = vrot.slane %v1488, 6
      %v1584 = vrot.slane %v1488, 7
      %v1593 = vmul.f32 %v1569, %v1488
      %v1594 = vmul.f32 %v1570, %v1578
      %v1595 = vmul.f32 %v1571, %v1579
      %v1596 = vmul.f32 %v1572, %v1580
      %v1597 = vmul.f32 %v1573, %v1581
      %v1598 = vmul.f32 %v1574, %v1582
      %v1599 = vmul.f32 %v1575, %v1583
      %v1600 = vmul.f32 %v1576, %v1584
      %v1601 = vtanh.pop %v1593
      %v1602 = vtanh.pop %v1594
      %v1603 = vtanh.pop %v1595
      %v1604 = vtanh.pop %v1596
      %v1605 = vtanh.pop %v1597
      %v1606 = vtanh.pop %v1598
      %v1607 = vtanh.pop %v1599
      %v1608 = vtanh.pop %v1600
      %v1609 = vld [vmem:[%s7] sm:$0xff]
      %v1610 = vld [vmem:[%s7 + $0x8] sm:$0xff]
      %v1611 = vld [vmem:[%s7 + $0x10] sm:$0xff]
      %v1612 = vld [vmem:[%s7 + $0x18] sm:$0xff]
      %v1613 = vld [vmem:[%s7 + $0x20] sm:$0xff]
      %v1614 = vld [vmem:[%s7 + $0x28] sm:$0xff]
      %v1615 = vld [vmem:[%s7 + $0x30] sm:$0xff]
      %v1616 = vld [vmem:[%s7 + $0x38] sm:$0xff]
      %v1617 = vld [vmem:[%s431] sm:$0xff]
      %v1626 = vrot.slane %v1602, 7
      %v1627 = vsel %vm1367, %v1626, %v1601
      %v1628 = vrot.slane %v1603, 6
      %v1629 = vsel %vm1370, %v1628, %v1627
      %v1630 = vrot.slane %v1604, 5
      %v1631 = vsel %vm1373, %v1630, %v1629
      %v1632 = vrot.slane %v1605, 4
      %v1633 = vsel %vm1376, %v1632, %v1631
      %v1634 = vrot.slane %v1606, 3
      %v1635 = vsel %vm1379, %v1634, %v1633
      %v1636 = vrot.slane %v1607, 2
      %v1637 = vsel %vm1382, %v1636, %v1635
      %v1638 = vrot.slane %v1608, 1
      %v1639 = vsel %vm1385, %v1638, %v1637
      %v1640 = vsel %vm740, %v1639, 0
      %1642 = vmatpush.msra.mxu0 0.0
      %1643 = vmatpush.msra.mxu0 0.0
      %1644 = vmatpush.msra.mxu0 0.0
      %1645 = vmatpush.msra.mxu0 0.0
      %1646 = vmatpush.msra.mxu0 0.0
      %1647 = vmatpush.msra.mxu0 0.0
      %1648 = vmatpush.msra.mxu0 0.0
      %1649 = vmatpush.msra.mxu0 0.0
      %1650 = vmatpush.msra.mxu0 %v1616
      %1651 = vmatpush.msra.mxu0 %v1615
      %1652 = vmatpush.msra.mxu0 %v1614
      %1653 = vmatpush.msra.mxu0 %v1613
      %1654 = vmatpush.msra.mxu0 %v1612
      %1655 = vmatpush.msra.mxu0 %v1611
      %1656 = vmatpush.msra.mxu0 %v1610
      %1657 = vmatpush.msra.mxu0 %v1609
      %1658 = vmatmul.f32.gmra.mxu0 %v1640
      %v1659 = vpop.f32.mrf.mxu0
      %v1660 = vadd.f32 %v1617, %v1659
      %1661 = vdwg.mxu0
      %1662 = vmax.xlane.f32.xlu0 %v1660
      %v1663 = vpop.xlane.xlu0 %1662
      %v1664 = vsub.f32 %v1660, %v1663
      %v1665 = vmul.f32 %v1664, 1.442695
      %v1666 = vpow.pop %v1665
      %1667 = vadd.xlane.f32.xlu0 %v1666
      %v1668 = vpop.xlane.xlu0 %1667
      %v1669 = vrcp.pop %v1668
      %v1670 = vmul.f32 %v1666, %v1669
      %1671 = vst [vmem:[%s435] sm:$0xff] %v1670
      %p1672 = scmp.lt.s32.totalorder %s20, 1
      %s1673 = scalar_select %p1672, %s20, 1
      %s1674 = smul.addr %s1673, 8
      %s1675 = scalar_lea.vmem %s9, %s1674
      // Predicated region
      $region57: #{pcnn_att_forward.1} parent=55 // pred_check
        %p1676 = pneg %p257
      $region58: #{pcnn_att_forward.1} parent=55 // pred_check_branch
        %1678 = sbr.rel (%p1676) target = $region60
      $region59: #{pcnn_att_forward.1} parent=55 // pred_region
        _
      $region60: #{pcnn_att_forward.1} parent=55 // pred_fallthru
        _
    $region56: #{pcnn_att_forward.1} parent=5 // pred_fallthru
      _
    %p1679 = scmp.le.s32.totalorder 2, %s15
    // Predicated region
    $region61: #{pcnn_att_forward.1} parent=5 // pred_check
      %p1680 = pneg %p1679
    $region62: #{pcnn_att_forward.1} parent=5 // pred_check_branch
      %1682 = sbr.rel (%p1680) target = $region64
    $region63: #{pcnn_att_forward.1} parent=5 // pred_region
      %s1683 = ssub.s32 %s15, 2
      // Predicated region
      $region65: #{pcnn_att_forward.1} parent=63 // pred_check
        %p1684 = pneg %p263
      $region66: #{pcnn_att_forward.1} parent=63 // pred_check_branch
        %1686 = sbr.rel (%p1684) target = $region68
      $region67: #{pcnn_att_forward.1} parent=63 // pred_region
        %p1687 = scmp.lt.s32.totalorder %s21, 1
        %s1688 = scalar_select %p1687, %s21, 1
        %s1689 = smul.addr %s1688, 8
        %s1690 = scalar_lea.vmem %s9, %s1689
      $region68: #{pcnn_att_forward.1} parent=63 // pred_fallthru
        _
    $region64: #{pcnn_att_forward.1} parent=5 // pred_fallthru
      _
  $region6: #{pcnn_att_forward.1} parent=0 // loop_footer
    %s19 = sadd.s32 1, %s15
  $region7: #{pcnn_att_forward.1} parent=0 // loop_footer_branch
    %14 = sbr.rel target = $region3
  $region8: #{pcnn_att_forward.1} parent=0 // loop_exit
    _

</llo_original>
